<compile_context>
chip_gen: v5e
topology: v5e:2x2
jax: 0.10.0
libtpu: 0.0.40
codegen_flags: <defaults>
</compile_context>

<pallas_src>
import math
import numpy as np
import jax
import jax.numpy as jnp
from jax.experimental import pallas as pl
from jax.experimental.pallas import tpu as pltpu


# ----------------------------------------------------------------------------
# Pallas kernels
# ----------------------------------------------------------------------------
def _matmul_bias_relu_kernel(x_ref, w_ref, b_ref, o_ref):
    """o = relu(x @ w + b); bf16 MXU operands, f32 accumulation/activation."""
    y = jnp.dot(x_ref[...].astype(jnp.bfloat16), w_ref[...],
                preferred_element_type=jnp.float32)
    o_ref[...] = jnp.maximum(y + b_ref[...], 0.0)


def pallas_matmul_bias_relu(x, w_bf16, b):
    """relu(x @ w + b); x:(M,K) f32, w:(K,N) bf16, b:(1,N) f32.

    Full-array blocks, single grid step: M/K/N here are tiny (<= 200x576), so no
    row padding, no partial-tile masking, and weights/activations are DMA'd once.
    """
    M, K = x.shape
    Kw, Nout = w_bf16.shape
    assert K == Kw
    return pl.pallas_call(
        _matmul_bias_relu_kernel,
        out_shape=jax.ShapeDtypeStruct((M, Nout), jnp.float32),
        grid=(1,),
        in_specs=[pl.BlockSpec((M, K), lambda i: (0, 0)),
                  pl.BlockSpec((K, Nout), lambda i: (0, 0)),
                  pl.BlockSpec((1, Nout), lambda i: (0, 0))],
        out_specs=pl.BlockSpec((M, Nout), lambda i: (0, 0)),
        compiler_params=pltpu.CompilerParams(dimension_semantics=("arbitrary",)),
    )(x, w_bf16, b)


def _fused_umnn_kernel_factory(num_h_hidden, num_i_mid):
    """Whole UMNN head as ONE kernel.

    Ref order (all full blocks): flat, rsel, rfull, qmat, xs, tau,
      fc_w, fc_b,
      [h-net hidden (w, b)] * num_h_hidden, h_w_off, h_b_off, h_w_scl, h_b_scl,
      i_w1x, i_w1h, i_b1, [integrand mid (w, b)] * num_i_mid, i_w_last, i_b_last,
      o_ref (output).
    """
    def kernel(*refs):
        o_ref = refs[-1]
        it = iter(refs[:-1])
        nxt = lambda: next(it)[...]
        f32, bf16 = jnp.float32, jnp.bfloat16

        def mm(x, w):                       # bf16 MXU matmul, f32 accumulation
            return jnp.dot(x.astype(bf16), w, preferred_element_type=f32)

        flat = nxt(); rsel = nxt(); rfull = nxt(); qmat = nxt()
        xs = nxt(); tau = nxt()

        # state embedding: Linear + ReLU                                  (B, E)
        emb = jnp.maximum(mm(flat, nxt()) + nxt(), 0.0)

        # ---- h-net (computed per state; row-repeat commutes with a row-wise MLP)
        e = emb
        for _ in range(num_h_hidden):
            e = jnp.maximum(mm(e, nxt()) + nxt(), 0.0)
        # last layer split into (offset | log-scaling) halves; expand B -> N rows
        # with a 0/1 selection matmul (lane-dense, MXU) instead of jnp.repeat.
        offset = jnp.dot(rsel, mm(e, nxt()) + nxt(),
                         preferred_element_type=f32)                      # (N, A)
        scaling = jnp.exp(jnp.dot(rsel, mm(e, nxt()) + nxt(),
                                  preferred_element_type=f32))            # (N, A)

        # ---- integrand MLP over all N*(steps+1) Clenshaw-Curtis nodes
        h_big = jnp.dot(rfull, emb, preferred_element_type=f32)           # (NS, E)
        w1x = nxt(); w1h = nxt(); b1 = nxt()
        g = jnp.maximum(mm(h_big, w1h) + xs * w1x + b1, 0.0)              # (NS, H1)
        for _ in range(num_i_mid):
            g = jnp.maximum(mm(g, nxt()) + nxt(), 0.0)
        z = mm(g, nxt()) + nxt()                                          # (NS, A)
        g_last = jnp.where(z > 0.0, z + 1.0, jnp.exp(z))                  # ELU(z)+1

        # ---- quadrature reduction as a matmul: integral[n] = sum_s ccw[s]*g[n,s]
        integral = jnp.dot(qmat, g_last, preferred_element_type=f32)      # (N, A)
        o_ref[...] = scaling * (tau * 0.5) * integral + offset
    return kernel


# ----------------------------------------------------------------------------
# Plain-JAX / numpy glue
# ----------------------------------------------------------------------------
def compute_cc_weights_np(nb_steps):
    """Clenshaw-Curtis weights/abscissas (same formula as the UMNN reference)."""
    lam = np.arange(0, nb_steps + 1, 1).reshape(-1, 1).astype(np.float64)
    lam = np.cos((lam @ lam.T) * math.pi / nb_steps)
    lam[:, 0] = 0.5
    lam[:, -1] = 0.5 * lam[:, -1]
    lam = lam * 2.0 / nb_steps
    W = np.arange(0, nb_steps + 1, 1).reshape(-1, 1).astype(np.float64)
    W[np.arange(1, nb_steps + 1, 2)] = 0
    W = 2.0 / (1.0 - W ** 2)
    W[0] = 1.0
    W[np.arange(1, nb_steps + 1, 2)] = 0
    cc_weights = (lam.T @ W).astype(np.float32)                  # (nb_steps+1, 1)
    steps = np.cos(np.arange(0, nb_steps + 1, 1).reshape(-1, 1)
                   * math.pi / nb_steps).astype(np.float32)      # (nb_steps+1, 1)
    return cc_weights, steps


def im2col(x, k, s):
    """x: (B, H, W, C) NHWC -> (B*Ho*Wo, k*k*C), patch features ordered (ki, kj, c)."""
    B, H, W, C = x.shape
    Ho = (H - k) // s + 1
    Wo = (W - k) // s + 1
    patches = []
    for i in range(k):
        for j in range(k):
            patches.append(x[:, i:i + s * (Ho - 1) + 1:s, j:j + s * (Wo - 1) + 1:s, :])
    cols = jnp.stack(patches, axis=3)                            # (B, Ho, Wo, k*k, C)
    return cols.reshape(B * Ho * Wo, k * k * C), Ho, Wo


def _lin_init(key, fan_in, fan_out):
    k1, k2 = jax.random.split(key)
    bound = 1.0 / math.sqrt(fan_in)
    w = jax.random.uniform(k1, (fan_in, fan_out), jnp.float32, -bound, bound)
    b = jax.random.uniform(k2, (fan_out,), jnp.float32, -bound, bound)
    return w, b


# ----------------------------------------------------------------------------
# Model
# ----------------------------------------------------------------------------
class UMDQNWModelAtariPallas:
    """JAX/Pallas port of UMDQN_W_Model_Atari (DNN_Atari embedding + UMNN)."""

    def __init__(self, numberOfInputs, numberOfOutputs, structureUMNN,
                 stateEmbedding, numberOfSteps, inputHeight, inputWidth, key):
        assert len(structureUMNN) >= 1
        self.A = numberOfOutputs
        self.E = stateEmbedding
        self.nb_steps = numberOfSteps
        A = numberOfOutputs

        keys = iter(jax.random.split(key, 64))

        # --- DNN_Atari: Conv(C->32,8/4) ReLU, Conv(32->64,4/2) ReLU,
        #                Conv(64->64,3/1) ReLU, Flatten, Linear(flat->E), ReLU
        self.conv_cfg = [(numberOfInputs, 32, 8, 4), (32, 64, 4, 2), (64, 64, 3, 1)]
        self.conv_w, self.conv_b = [], []
        h, w = inputHeight, inputWidth
        for cin, cout, k, s in self.conv_cfg:
            W_, b_ = _lin_init(next(keys), cin * k * k, cout)
            self.conv_w.append(W_.astype(jnp.bfloat16))
            self.conv_b.append(b_.reshape(1, cout))
            h = (h - k) // s + 1
            w = (w - k) // s + 1
        flat_dim = h * w * 64
        Wfc, bfc = _lin_init(next(keys), flat_dim, stateEmbedding)
        self.fc_w = Wfc.astype(jnp.bfloat16)
        self.fc_b = bfc.reshape(1, stateEmbedding)

        # --- MonotonicNN h-net: [E] + structureUMNN + [2A]  (ReLU, last linear)
        hs = [stateEmbedding] + list(structureUMNN) + [2 * A]
        self.hnet_hidden = []
        for a, b_ in zip(hs[:-2], hs[1:-1]):
            W_, bb = _lin_init(next(keys), a, b_)
            self.hnet_hidden.append((W_.astype(jnp.bfloat16), bb.reshape(1, -1)))
        Wl, bl = _lin_init(next(keys), hs[-2], hs[-1])
        self.hnet_w_off = Wl[:, :A].astype(jnp.bfloat16)      # offset half
        self.hnet_b_off = bl[:A].reshape(1, A)
        self.hnet_w_scl = Wl[:, A:].astype(jnp.bfloat16)      # log-scaling half
        self.hnet_b_scl = bl[A:].reshape(1, A)

        # --- integrand: [E+1] + structureUMNN + [A]  (ReLU, last = ELU(y)+1)
        gs = [stateEmbedding + 1] + list(structureUMNN) + [A]
        W1, b1 = _lin_init(next(keys), gs[0], gs[1])
        self.inet_w1x = W1[0:1, :]                            # tau column (f32, VPU)
        self.inet_w1h = W1[1:, :].astype(jnp.bfloat16)        # embedding columns
        self.inet_b1 = b1.reshape(1, -1)
        self.inet_mid = []
        for a, b_ in zip(gs[1:-2], gs[2:-1]):
            W_, bb = _lin_init(next(keys), a, b_)
            self.inet_mid.append((W_.astype(jnp.bfloat16), bb.reshape(1, -1)))
        Wl, bl = _lin_init(next(keys), gs[-2], gs[-1])
        self.inet_w_last = Wl.astype(jnp.bfloat16)
        self.inet_b_last = bl.reshape(1, -1)

        self.cc_weights, self.cc_steps = compute_cc_weights_np(numberOfSteps)  # np

    def forward(self, state, taus):
        """state: (B, C, H, W) NCHW float32; taus: (N, 1) with N = B * taus_per_state."""
        B = state.shape[0]
        N = taus.shape[0]
        assert N % B == 0, "number of tau samples must be a multiple of the batch"
        r = N // B
        A = self.A
        S1 = self.nb_steps + 1
        NS = N * S1

        x = jnp.transpose(state, (0, 2, 3, 1)).astype(jnp.float32)       # NHWC

        # state-embedding CNN (im2col glue + full-block Pallas matmul per layer)
        for Wc, bc, (cin, cout, k, s) in zip(self.conv_w, self.conv_b, self.conv_cfg):
            cols, Ho, Wo = im2col(x, k, s)
            y = pallas_matmul_bias_relu(cols, Wc, bc)
            x = y.reshape(B, Ho, Wo, cout)
        flat = x.reshape(B, -1)                                          # (B, F)

        # selection / quadrature constants (shape-static numpy -> device constants)
        rsel = np.zeros((N, B), np.float32)
        rsel[np.arange(N), np.arange(N) // r] = 1.0                      # (N, B)
        rfull = np.zeros((NS, B), np.float32)
        rfull[np.arange(NS), (np.arange(NS) // S1) // r] = 1.0           # (NS, B)
        qmat = np.kron(np.eye(N, dtype=np.float32),
                       self.cc_weights.reshape(1, S1)).astype(np.float32)  # (N, NS)

        taus = taus.reshape(N, 1).astype(jnp.float32)
        steps01 = jnp.asarray(((self.cc_steps.reshape(1, S1) + 1.0) * 0.5)
                              .astype(np.float32))
        xs = (taus * steps01).reshape(NS, 1)     # abscissas in [0, tau], (n, s) order

        args = [flat, jnp.asarray(rsel), jnp.asarray(rfull), jnp.asarray(qmat),
                xs, taus, self.fc_w, self.fc_b]
        for W_, b_ in self.hnet_hidden:
            args += [W_, b_]
        args += [self.hnet_w_off, self.hnet_b_off, self.hnet_w_scl, self.hnet_b_scl,
                 self.inet_w1x, self.inet_w1h, self.inet_b1]
        for W_, b_ in self.inet_mid:
            args += [W_, b_]
        args += [self.inet_w_last, self.inet_b_last]

        kernel = _fused_umnn_kernel_factory(len(self.hnet_hidden), len(self.inet_mid))
        out = pl.pallas_call(
            kernel,
            out_shape=jax.ShapeDtypeStruct((N, A), jnp.float32),
            grid=(1,),
            in_specs=[pl.BlockSpec(a.shape, lambda i: (0, 0)) for a in args],
            out_specs=pl.BlockSpec((N, A), lambda i: (0, 0)),
            compiler_params=pltpu.CompilerParams(dimension_semantics=("arbitrary",)),
        )(*args)

        # torch.cat(torch.chunk(out.T, B, dim=1), 0)  ->  (B*A, r)
        return out.reshape(B, r, A).transpose(0, 2, 1).reshape(B * A, r)


# ----------------------------------------------------------------------------
# Pure-JAX reference (mirrors the original PyTorch computation order) for checking
# ----------------------------------------------------------------------------
def _reference_forward(model, state, taus):
    f32 = jnp.float32
    B = state.shape[0]
    N = taus.shape[0]
    r = N // B
    A = model.A
    S1 = model.nb_steps + 1

    x = jnp.transpose(state, (0, 2, 3, 1)).astype(f32)
    for Wc, bc, (cin, cout, k, s) in zip(model.conv_w, model.conv_b, model.conv_cfg):
        cols, Ho, Wo = im2col(x, k, s)
        x = jnp.maximum(cols @ Wc.astype(f32) + bc, 0.0).reshape(B, Ho, Wo, cout)
    flat = x.reshape(B, -1)
    emb = jnp.maximum(flat @ model.fc_w.astype(f32) + model.fc_b, 0.0)   # (B, E)

    h = jnp.repeat(emb, r, axis=0)                                       # (N, E)
    z = h
    for W_, b_ in model.hnet_hidden:
        z = jnp.maximum(z @ W_.astype(f32) + b_, 0.0)
    Wl = jnp.concatenate([model.hnet_w_off.astype(f32),
                          model.hnet_w_scl.astype(f32)], axis=1)
    bl = jnp.concatenate([model.hnet_b_off, model.hnet_b_scl], axis=1)
    hnet_out = z @ Wl + bl                                               # (N, 2A)
    offset, logscale = hnet_out[:, :A], hnet_out[:, A:]

    taus2 = taus.reshape(N, 1).astype(f32)
    steps = jnp.asarray(model.cc_steps.reshape(1, S1))
    ccw = jnp.asarray(model.cc_weights.reshape(1, S1))
    x_steps = taus2 * (steps + 1.0) * 0.5                                # (N, S1)
    W1 = jnp.concatenate([model.inet_w1x, model.inet_w1h.astype(f32)], axis=0)
    inp = jnp.concatenate(
        [x_steps.reshape(N, S1, 1),
         jnp.broadcast_to(h[:, None, :], (N, S1, model.E))],
        axis=-1).reshape(N * S1, model.E + 1)
    g = jnp.maximum(inp @ W1 + model.inet_b1, 0.0)
    for W_, b_ in model.inet_mid:
        g = jnp.maximum(g @ W_.astype(f32) + b_, 0.0)
    zl = g @ model.inet_w_last.astype(f32) + model.inet_b_last
    dz = jnp.where(zl > 0.0, zl + 1.0, jnp.exp(zl)).reshape(N, S1, A)
    integral = jnp.sum(dz * ccw[..., None], axis=1)                      # (N, A)
    out = jnp.exp(logscale) * (taus2 * 0.5) * integral + offset
    return out.reshape(B, r, A).transpose(0, 2, 1).reshape(B * A, r)


# ----------------------------------------------------------------------------
if __name__ == "__main__":
    key = jax.random.PRNGKey(0)
    k_param, k_state, k_tau = jax.random.split(key, 3)

    B, C, H, W = 2, 4, 44, 44          # small Atari-like state stack (NCHW)
    A = 4                               # numberOfOutputs (actions)
    E = 32                              # stateEmbedding
    structure = [32, 32]                # structureUMNN
    steps = 8                           # numberOfSteps (quadrature)
    r = 8                               # taus per state
    N = B * r

    model = UMDQNWModelAtariPallas(C, A, structure, E, steps, H, W, k_param)
    state = jax.random.uniform(k_state, (B, C, H, W), jnp.float32)
    taus = jax.random.uniform(k_tau, (N, 1), jnp.float32)

    fwd = jax.jit(model.forward)
    out = jax.block_until_ready(fwd(state, taus))
    assert out.shape == (B * A, r), out.shape
    assert bool(jnp.all(jnp.isfinite(out)))

    ref = jax.block_until_ready(_reference_forward(model, state, taus))
    out_np, ref_np = np.asarray(out), np.asarray(ref)
    assert np.allclose(out_np, ref_np, rtol=5e-2, atol=5e-2), \
        float(np.max(np.abs(out_np - ref_np)))

    print("KERNEL_OK")
</pallas_src>

<mosaic_0001>
module attributes {stable_mosaic.version = 11 : i64} {
  func.func @_matmul_bias_relu_kernel(%arg0: i32, %arg1: memref<200x256xf32, #tpu.memory_space<vmem>>, %arg2: memref<256x32xbf16, #tpu.memory_space<vmem>>, %arg3: memref<1x32xf32, #tpu.memory_space<vmem>>, %arg4: memref<200x32xf32, #tpu.memory_space<vmem>>) attributes {dimension_semantics = [#tpu.dimension_semantics<arbitrary>], iteration_bounds = array<i64: 1>, scalar_prefetch = 0 : i64, scratch_operands = 0 : i64, tpu.core_type = #tpu.core_type<tc>, window_params = [{pipeline_mode = #tpu.pipeline_mode<synchronous>, transform_indices = @transform_0, window_bounds = array<i64: 200, 256>}, {pipeline_mode = #tpu.pipeline_mode<synchronous>, transform_indices = @transform_1, window_bounds = array<i64: 256, 32>}, {pipeline_mode = #tpu.pipeline_mode<synchronous>, transform_indices = @transform_2, window_bounds = array<i64: 1, 32>}, {pipeline_mode = #tpu.pipeline_mode<synchronous>, transform_indices = @transform_3, window_bounds = array<i64: 200, 32>}]} {
    %c0 = arith.constant 0 : index
    %c0_0 = arith.constant 0 : index
    %0 = vector.load %arg1[%c0, %c0_0] : memref<200x256xf32, #tpu.memory_space<vmem>>, vector<200x256xf32>
    %1 = arith.truncf %0 : vector<200x256xf32> to vector<200x256xbf16>
    %c0_1 = arith.constant 0 : index
    %c0_2 = arith.constant 0 : index
    %2 = vector.load %arg2[%c0_1, %c0_2] : memref<256x32xbf16, #tpu.memory_space<vmem>>, vector<256x32xbf16>
    %cst = arith.constant dense<0.000000e+00> : vector<200x32xf32>
    %3 = tpu.matmul %1, %2, %cst {dimension_numbers = #tpu.dot_dimension_numbers<[1], [0], [0], [1], [0, 0, 1, 1], [], []>} : vector<200x256xbf16>, vector<256x32xbf16>, vector<200x32xf32> -> vector<200x32xf32>
    %c0_3 = arith.constant 0 : index
    %c0_4 = arith.constant 0 : index
    %4 = vector.load %arg3[%c0_3, %c0_4] : memref<1x32xf32, #tpu.memory_space<vmem>>, vector<1x32xf32>
    %5 = vector.broadcast %4 : vector<1x32xf32> to vector<200x32xf32>
    %6 = arith.addf %3, %5 : vector<200x32xf32>
    %cst_5 = arith.constant 0.000000e+00 : f32
    %7 = vector.broadcast %cst_5 : f32 to vector<200x32xf32>
    %8 = arith.maximumf %6, %7 : vector<200x32xf32>
    %c0_6 = arith.constant 0 : index
    %c0_7 = arith.constant 0 : index
    %9 = vector.load %arg4[%c0_6, %c0_7] : memref<200x32xf32, #tpu.memory_space<vmem>>, vector<200x32xf32>
    tpu.vector_store %arg4[%c0_6, %c0_7], %8 {strides = array<i32>} : memref<200x32xf32, #tpu.memory_space<vmem>>, vector<200x32xf32>,
    return
  }
  func.func @transform_0(%arg0: i32) -> (i32, i32) {
    %c0_i32 = arith.constant 0 : i32
    %c0_i32_0 = arith.constant 0 : i32
    %c0_i32_1 = arith.constant 0 : i32
    return %c0_i32, %c0_i32_0 : i32, i32
  }
  func.func @transform_1(%arg0: i32) -> (i32, i32) {
    %c0_i32 = arith.constant 0 : i32
    %c0_i32_0 = arith.constant 0 : i32
    %c0_i32_1 = arith.constant 0 : i32
    return %c0_i32, %c0_i32_0 : i32, i32
  }
  func.func @transform_2(%arg0: i32) -> (i32, i32) {
    %c0_i32 = arith.constant 0 : i32
    %c0_i32_0 = arith.constant 0 : i32
    %c0_i32_1 = arith.constant 0 : i32
    return %c0_i32, %c0_i32_0 : i32, i32
  }
  func.func @transform_3(%arg0: i32) -> (i32, i32) {
    %c0_i32 = arith.constant 0 : i32
    %c0_i32_0 = arith.constant 0 : i32
    %c0_i32_1 = arith.constant 0 : i32
    return %c0_i32, %c0_i32_0 : i32, i32
  }
}

module attributes {stable_mosaic.version = 11 : i64} {
  func.func @_matmul_bias_relu_kernel(%arg0: i32, %arg1: memref<32x512xf32, #tpu.memory_space<vmem>>, %arg2: memref<512x64xbf16, #tpu.memory_space<vmem>>, %arg3: memref<1x64xf32, #tpu.memory_space<vmem>>, %arg4: memref<32x64xf32, #tpu.memory_space<vmem>>) attributes {dimension_semantics = [#tpu.dimension_semantics<arbitrary>], iteration_bounds = array<i64: 1>, scalar_prefetch = 0 : i64, scratch_operands = 0 : i64, tpu.core_type = #tpu.core_type<tc>, window_params = [{pipeline_mode = #tpu.pipeline_mode<synchronous>, transform_indices = @transform_0, window_bounds = array<i64: 32, 512>}, {pipeline_mode = #tpu.pipeline_mode<synchronous>, transform_indices = @transform_1, window_bounds = array<i64: 512, 64>}, {pipeline_mode = #tpu.pipeline_mode<synchronous>, transform_indices = @transform_2, window_bounds = array<i64: 1, 64>}, {pipeline_mode = #tpu.pipeline_mode<synchronous>, transform_indices = @transform_3, window_bounds = array<i64: 32, 64>}]} {
    %c0 = arith.constant 0 : index
    %c0_0 = arith.constant 0 : index
    %0 = vector.load %arg1[%c0, %c0_0] : memref<32x512xf32, #tpu.memory_space<vmem>>, vector<32x512xf32>
    %1 = arith.truncf %0 : vector<32x512xf32> to vector<32x512xbf16>
    %c0_1 = arith.constant 0 : index
    %c0_2 = arith.constant 0 : index
    %2 = vector.load %arg2[%c0_1, %c0_2] : memref<512x64xbf16, #tpu.memory_space<vmem>>, vector<512x64xbf16>
    %cst = arith.constant dense<0.000000e+00> : vector<32x64xf32>
    %3 = tpu.matmul %1, %2, %cst {dimension_numbers = #tpu.dot_dimension_numbers<[1], [0], [0], [1], [0, 0, 1, 1], [], []>} : vector<32x512xbf16>, vector<512x64xbf16>, vector<32x64xf32> -> vector<32x64xf32>
    %c0_3 = arith.constant 0 : index
    %c0_4 = arith.constant 0 : index
    %4 = vector.load %arg3[%c0_3, %c0_4] : memref<1x64xf32, #tpu.memory_space<vmem>>, vector<1x64xf32>
    %5 = vector.broadcast %4 : vector<1x64xf32> to vector<32x64xf32>
    %6 = arith.addf %3, %5 : vector<32x64xf32>
    %cst_5 = arith.constant 0.000000e+00 : f32
    %7 = vector.broadcast %cst_5 : f32 to vector<32x64xf32>
    %8 = arith.maximumf %6, %7 : vector<32x64xf32>
    %c0_6 = arith.constant 0 : index
    %c0_7 = arith.constant 0 : index
    %9 = vector.load %arg4[%c0_6, %c0_7] : memref<32x64xf32, #tpu.memory_space<vmem>>, vector<32x64xf32>
    tpu.vector_store %arg4[%c0_6, %c0_7], %8 {strides = array<i32>} : memref<32x64xf32, #tpu.memory_space<vmem>>, vector<32x64xf32>,
    return
  }
  func.func @transform_0(%arg0: i32) -> (i32, i32) {
    %c0_i32 = arith.constant 0 : i32
    %c0_i32_0 = arith.constant 0 : i32
    %c0_i32_1 = arith.constant 0 : i32
    return %c0_i32, %c0_i32_0 : i32, i32
  }
  func.func @transform_1(%arg0: i32) -> (i32, i32) {
    %c0_i32 = arith.constant 0 : i32
    %c0_i32_0 = arith.constant 0 : i32
    %c0_i32_1 = arith.constant 0 : i32
    return %c0_i32, %c0_i32_0 : i32, i32
  }
  func.func @transform_2(%arg0: i32) -> (i32, i32) {
    %c0_i32 = arith.constant 0 : i32
    %c0_i32_0 = arith.constant 0 : i32
    %c0_i32_1 = arith.constant 0 : i32
    return %c0_i32, %c0_i32_0 : i32, i32
  }
  func.func @transform_3(%arg0: i32) -> (i32, i32) {
    %c0_i32 = arith.constant 0 : i32
    %c0_i32_0 = arith.constant 0 : i32
    %c0_i32_1 = arith.constant 0 : i32
    return %c0_i32, %c0_i32_0 : i32, i32
  }
}

module attributes {stable_mosaic.version = 11 : i64} {
  func.func @kernel(%arg0: i32, %arg1: memref<2x256xf32, #tpu.memory_space<vmem>>, %arg2: memref<16x2xf32, #tpu.memory_space<vmem>>, %arg3: memref<144x2xf32, #tpu.memory_space<vmem>>, %arg4: memref<16x144xf32, #tpu.memory_space<vmem>>, %arg5: memref<144x1xf32, #tpu.memory_space<vmem>>, %arg6: memref<16x1xf32, #tpu.memory_space<vmem>>, %arg7: memref<256x32xbf16, #tpu.memory_space<vmem>>, %arg8: memref<1x32xf32, #tpu.memory_space<vmem>>, %arg9: memref<32x32xbf16, #tpu.memory_space<vmem>>, %arg10: memref<1x32xf32, #tpu.memory_space<vmem>>, %arg11: memref<32x32xbf16, #tpu.memory_space<vmem>>, %arg12: memref<1x32xf32, #tpu.memory_space<vmem>>, %arg13: memref<32x4xbf16, #tpu.memory_space<vmem>>, %arg14: memref<1x4xf32, #tpu.memory_space<vmem>>, %arg15: memref<32x4xbf16, #tpu.memory_space<vmem>>, %arg16: memref<1x4xf32, #tpu.memory_space<vmem>>, %arg17: memref<1x32xf32, #tpu.memory_space<vmem>>, %arg18: memref<32x32xbf16, #tpu.memory_space<vmem>>, %arg19: memref<1x32xf32, #tpu.memory_space<vmem>>, %arg20: memref<32x32xbf16, #tpu.memory_space<vmem>>, %arg21: memref<1x32xf32, #tpu.memory_space<vmem>>, %arg22: memref<32x4xbf16, #tpu.memory_space<vmem>>, %arg23: memref<1x4xf32, #tpu.memory_space<vmem>>, %arg24: memref<16x4xf32, #tpu.memory_space<vmem>>) attributes {dimension_semantics = [#tpu.dimension_semantics<arbitrary>], iteration_bounds = array<i64: 1>, scalar_prefetch = 0 : i64, scratch_operands = 0 : i64, tpu.core_type = #tpu.core_type<tc>, window_params = [{pipeline_mode = #tpu.pipeline_mode<synchronous>, transform_indices = @transform_0, window_bounds = array<i64: 2, 256>}, {pipeline_mode = #tpu.pipeline_mode<synchronous>, transform_indices = @transform_1, window_bounds = array<i64: 16, 2>}, {pipeline_mode = #tpu.pipeline_mode<synchronous>, transform_indices = @transform_2, window_bounds = array<i64: 144, 2>}, {pipeline_mode = #tpu.pipeline_mode<synchronous>, transform_indices = @transform_3, window_bounds = array<i64: 16, 144>}, {pipeline_mode = #tpu.pipeline_mode<synchronous>, transform_indices = @transform_4, window_bounds = array<i64: 144, 1>}, {pipeline_mode = #tpu.pipeline_mode<synchronous>, transform_indices = @transform_5, window_bounds = array<i64: 16, 1>}, {pipeline_mode = #tpu.pipeline_mode<synchronous>, transform_indices = @transform_6, window_bounds = array<i64: 256, 32>}, {pipeline_mode = #tpu.pipeline_mode<synchronous>, transform_indices = @transform_7, window_bounds = array<i64: 1, 32>}, {pipeline_mode = #tpu.pipeline_mode<synchronous>, transform_indices = @transform_8, window_bounds = array<i64: 32, 32>}, {pipeline_mode = #tpu.pipeline_mode<synchronous>, transform_indices = @transform_9, window_bounds = array<i64: 1, 32>}, {pipeline_mode = #tpu.pipeline_mode<synchronous>, transform_indices = @transform_10, window_bounds = array<i64: 32, 32>}, {pipeline_mode = #tpu.pipeline_mode<synchronous>, transform_indices = @transform_11, window_bounds = array<i64: 1, 32>}, {pipeline_mode = #tpu.pipeline_mode<synchronous>, transform_indices = @transform_12, window_bounds = array<i64: 32, 4>}, {pipeline_mode = #tpu.pipeline_mode<synchronous>, transform_indices = @transform_13, window_bounds = array<i64: 1, 4>}, {pipeline_mode = #tpu.pipeline_mode<synchronous>, transform_indices = @transform_14, window_bounds = array<i64: 32, 4>}, {pipeline_mode = #tpu.pipeline_mode<synchronous>, transform_indices = @transform_15, window_bounds = array<i64: 1, 4>}, {pipeline_mode = #tpu.pipeline_mode<synchronous>, transform_indices = @transform_16, window_bounds = array<i64: 1, 32>}, {pipeline_mode = #tpu.pipeline_mode<synchronous>, transform_indices = @transform_17, window_bounds = array<i64: 32, 32>}, {pipeline_mode = #tpu.pipeline_mode<synchronous>, transform_indices = @transform_18, window_bounds = array<i64: 1, 32>}, {pipeline_mode = #tpu.pipeline_mode<synchronous>, transform_indices = @transform_19, window_bounds = array<i64: 32, 32>}, {pipeline_mode = #tpu.pipeline_mode<synchronous>, transform_indices = @transform_20, window_bounds = array<i64: 1, 32>}, {pipeline_mode = #tpu.pipeline_mode<synchronous>, transform_indices = @transform_21, window_bounds = array<i64: 32, 4>}, {pipeline_mode = #tpu.pipeline_mode<synchronous>, transform_indices = @transform_22, window_bounds = array<i64: 1, 4>}, {pipeline_mode = #tpu.pipeline_mode<synchronous>, transform_indices = @transform_23, window_bounds = array<i64: 16, 4>}]} {
    %c0 = arith.constant 0 : index
    %c0_0 = arith.constant 0 : index
    %0 = vector.load %arg1[%c0, %c0_0] : memref<2x256xf32, #tpu.memory_space<vmem>>, vector<2x256xf32>
    %c0_1 = arith.constant 0 : index
    %c0_2 = arith.constant 0 : index
    %1 = vector.load %arg2[%c0_1, %c0_2] : memref<16x2xf32, #tpu.memory_space<vmem>>, vector<16x2xf32>
    %c0_3 = arith.constant 0 : index
    %c0_4 = arith.constant 0 : index
    %2 = vector.load %arg3[%c0_3, %c0_4] : memref<144x2xf32, #tpu.memory_space<vmem>>, vector<144x2xf32>
    %c0_5 = arith.constant 0 : index
    %c0_6 = arith.constant 0 : index
    %3 = vector.load %arg4[%c0_5, %c0_6] : memref<16x144xf32, #tpu.memory_space<vmem>>, vector<16x144xf32>
    %c0_7 = arith.constant 0 : index
    %c0_8 = arith.constant 0 : index
    %4 = vector.load %arg5[%c0_7, %c0_8] : memref<144x1xf32, #tpu.memory_space<vmem>>, vector<144x1xf32>
    %c0_9 = arith.constant 0 : index
    %c0_10 = arith.constant 0 : index
    %5 = vector.load %arg6[%c0_9, %c0_10] : memref<16x1xf32, #tpu.memory_space<vmem>>, vector<16x1xf32>
    %c0_11 = arith.constant 0 : index
    %c0_12 = arith.constant 0 : index
    %6 = vector.load %arg7[%c0_11, %c0_12] : memref<256x32xbf16, #tpu.memory_space<vmem>>, vector<256x32xbf16>
    %7 = arith.truncf %0 : vector<2x256xf32> to vector<2x256xbf16>
    %cst = arith.constant dense<0.000000e+00> : vector<2x32xf32>
    %8 = tpu.matmul %7, %6, %cst {dimension_numbers = #tpu.dot_dimension_numbers<[1], [0], [0], [1], [0, 0, 1, 1], [], []>} : vector<2x256xbf16>, vector<256x32xbf16>, vector<2x32xf32> -> vector<2x32xf32>
    %c0_13 = arith.constant 0 : index
    %c0_14 = arith.constant 0 : index
    %9 = vector.load %arg8[%c0_13, %c0_14] : memref<1x32xf32, #tpu.memory_space<vmem>>, vector<1x32xf32>
    %10 = vector.broadcast %9 : vector<1x32xf32> to vector<2x32xf32>
    %11 = arith.addf %8, %10 : vector<2x32xf32>
    %cst_15 = arith.constant 0.000000e+00 : f32
    %12 = vector.broadcast %cst_15 : f32 to vector<2x32xf32>
    %13 = arith.maximumf %11, %12 : vector<2x32xf32>
    %c0_16 = arith.constant 0 : index
    %c0_17 = arith.constant 0 : index
    %14 = vector.load %arg9[%c0_16, %c0_17] : memref<32x32xbf16, #tpu.memory_space<vmem>>, vector<32x32xbf16>
    %15 = arith.truncf %13 : vector<2x32xf32> to vector<2x32xbf16>
    %cst_18 = arith.constant dense<0.000000e+00> : vector<2x32xf32>
    %16 = tpu.matmul %15, %14, %cst_18 {dimension_numbers = #tpu.dot_dimension_numbers<[1], [0], [0], [1], [0, 0, 1, 1], [], []>} : vector<2x32xbf16>, vector<32x32xbf16>, vector<2x32xf32> -> vector<2x32xf32>
    %c0_19 = arith.constant 0 : index
    %c0_20 = arith.constant 0 : index
    %17 = vector.load %arg10[%c0_19, %c0_20] : memref<1x32xf32, #tpu.memory_space<vmem>>, vector<1x32xf32>
    %18 = vector.broadcast %17 : vector<1x32xf32> to vector<2x32xf32>
    %19 = arith.addf %16, %18 : vector<2x32xf32>
    %cst_21 = arith.constant 0.000000e+00 : f32
    %20 = vector.broadcast %cst_21 : f32 to vector<2x32xf32>
    %21 = arith.maximumf %19, %20 : vector<2x32xf32>
    %c0_22 = arith.constant 0 : index
    %c0_23 = arith.constant 0 : index
    %22 = vector.load %arg11[%c0_22, %c0_23] : memref<32x32xbf16, #tpu.memory_space<vmem>>, vector<32x32xbf16>
    %23 = arith.truncf %21 : vector<2x32xf32> to vector<2x32xbf16>
    %cst_24 = arith.constant dense<0.000000e+00> : vector<2x32xf32>
    %24 = tpu.matmul %23, %22, %cst_24 {dimension_numbers = #tpu.dot_dimension_numbers<[1], [0], [0], [1], [0, 0, 1, 1], [], []>} : vector<2x32xbf16>, vector<32x32xbf16>, vector<2x32xf32> -> vector<2x32xf32>
    %c0_25 = arith.constant 0 : index
    %c0_26 = arith.constant 0 : index
    %25 = vector.load %arg12[%c0_25, %c0_26] : memref<1x32xf32, #tpu.memory_space<vmem>>, vector<1x32xf32>
    %26 = vector.broadcast %25 : vector<1x32xf32> to vector<2x32xf32>
    %27 = arith.addf %24, %26 : vector<2x32xf32>
    %cst_27 = arith.constant 0.000000e+00 : f32
    %28 = vector.broadcast %cst_27 : f32 to vector<2x32xf32>
    %29 = arith.maximumf %27, %28 : vector<2x32xf32>
    %c0_28 = arith.constant 0 : index
    %c0_29 = arith.constant 0 : index
    %30 = vector.load %arg13[%c0_28, %c0_29] : memref<32x4xbf16, #tpu.memory_space<vmem>>, vector<32x4xbf16>
    %31 = arith.truncf %29 : vector<2x32xf32> to vector<2x32xbf16>
    %cst_30 = arith.constant dense<0.000000e+00> : vector<2x4xf32>
    %32 = tpu.matmul %31, %30, %cst_30 {dimension_numbers = #tpu.dot_dimension_numbers<[1], [0], [0], [1], [0, 0, 1, 1], [], []>} : vector<2x32xbf16>, vector<32x4xbf16>, vector<2x4xf32> -> vector<2x4xf32>
    %c0_31 = arith.constant 0 : index
    %c0_32 = arith.constant 0 : index
    %33 = vector.load %arg14[%c0_31, %c0_32] : memref<1x4xf32, #tpu.memory_space<vmem>>, vector<1x4xf32>
    %34 = vector.broadcast %33 : vector<1x4xf32> to vector<2x4xf32>
    %35 = arith.addf %32, %34 : vector<2x4xf32>
    %cst_33 = arith.constant dense<0.000000e+00> : vector<16x4xf32>
    %36 = tpu.matmul %1, %35, %cst_33 {dimension_numbers = #tpu.dot_dimension_numbers<[1], [0], [0], [1], [0, 0, 1, 1], [], []>} : vector<16x2xf32>, vector<2x4xf32>, vector<16x4xf32> -> vector<16x4xf32>
    %c0_34 = arith.constant 0 : index
    %c0_35 = arith.constant 0 : index
    %37 = vector.load %arg15[%c0_34, %c0_35] : memref<32x4xbf16, #tpu.memory_space<vmem>>, vector<32x4xbf16>
    %38 = arith.truncf %29 : vector<2x32xf32> to vector<2x32xbf16>
    %cst_36 = arith.constant dense<0.000000e+00> : vector<2x4xf32>
    %39 = tpu.matmul %38, %37, %cst_36 {dimension_numbers = #tpu.dot_dimension_numbers<[1], [0], [0], [1], [0, 0, 1, 1], [], []>} : vector<2x32xbf16>, vector<32x4xbf16>, vector<2x4xf32> -> vector<2x4xf32>
    %c0_37 = arith.constant 0 : index
    %c0_38 = arith.constant 0 : index
    %40 = vector.load %arg16[%c0_37, %c0_38] : memref<1x4xf32, #tpu.memory_space<vmem>>, vector<1x4xf32>
    %41 = vector.broadcast %40 : vector<1x4xf32> to vector<2x4xf32>
    %42 = arith.addf %39, %41 : vector<2x4xf32>
    %cst_39 = arith.constant dense<0.000000e+00> : vector<16x4xf32>
    %43 = tpu.matmul %1, %42, %cst_39 {dimension_numbers = #tpu.dot_dimension_numbers<[1], [0], [0], [1], [0, 0, 1, 1], [], []>} : vector<16x2xf32>, vector<2x4xf32>, vector<16x4xf32> -> vector<16x4xf32>
    %44 = math.exp %43 : vector<16x4xf32>
    %cst_40 = arith.constant dense<0.000000e+00> : vector<144x32xf32>
    %45 = tpu.matmul %2, %13, %cst_40 {dimension_numbers = #tpu.dot_dimension_numbers<[1], [0], [0], [1], [0, 0, 1, 1], [], []>} : vector<144x2xf32>, vector<2x32xf32>, vector<144x32xf32> -> vector<144x32xf32>
    %c0_41 = arith.constant 0 : index
    %c0_42 = arith.constant 0 : index
    %46 = vector.load %arg17[%c0_41, %c0_42] : memref<1x32xf32, #tpu.memory_space<vmem>>, vector<1x32xf32>
    %c0_43 = arith.constant 0 : index
    %c0_44 = arith.constant 0 : index
    %47 = vector.load %arg18[%c0_43, %c0_44] : memref<32x32xbf16, #tpu.memory_space<vmem>>, vector<32x32xbf16>
    %c0_45 = arith.constant 0 : index
    %c0_46 = arith.constant 0 : index
    %48 = vector.load %arg19[%c0_45, %c0_46] : memref<1x32xf32, #tpu.memory_space<vmem>>, vector<1x32xf32>
    %49 = arith.truncf %45 : vector<144x32xf32> to vector<144x32xbf16>
    %cst_47 = arith.constant dense<0.000000e+00> : vector<144x32xf32>
    %50 = tpu.matmul %49, %47, %cst_47 {dimension_numbers = #tpu.dot_dimension_numbers<[1], [0], [0], [1], [0, 0, 1, 1], [], []>} : vector<144x32xbf16>, vector<32x32xbf16>, vector<144x32xf32> -> vector<144x32xf32>
    %51 = vector.broadcast %4 : vector<144x1xf32> to vector<144x32xf32>
    %52 = vector.broadcast %46 : vector<1x32xf32> to vector<144x32xf32>
    %53 = arith.mulf %51, %52 : vector<144x32xf32>
    %54 = arith.addf %50, %53 : vector<144x32xf32>
    %55 = vector.broadcast %48 : vector<1x32xf32> to vector<144x32xf32>
    %56 = arith.addf %54, %55 : vector<144x32xf32>
    %cst_48 = arith.constant 0.000000e+00 : f32
    %57 = vector.broadcast %cst_48 : f32 to vector<144x32xf32>
    %58 = arith.maximumf %56, %57 : vector<144x32xf32>
    %c0_49 = arith.constant 0 : index
    %c0_50 = arith.constant 0 : index
    %59 = vector.load %arg20[%c0_49, %c0_50] : memref<32x32xbf16, #tpu.memory_space<vmem>>, vector<32x32xbf16>
    %60 = arith.truncf %58 : vector<144x32xf32> to vector<144x32xbf16>
    %cst_51 = arith.constant dense<0.000000e+00> : vector<144x32xf32>
    %61 = tpu.matmul %60, %59, %cst_51 {dimension_numbers = #tpu.dot_dimension_numbers<[1], [0], [0], [1], [0, 0, 1, 1], [], []>} : vector<144x32xbf16>, vector<32x32xbf16>, vector<144x32xf32> -> vector<144x32xf32>
    %c0_52 = arith.constant 0 : index
    %c0_53 = arith.constant 0 : index
    %62 = vector.load %arg21[%c0_52, %c0_53] : memref<1x32xf32, #tpu.memory_space<vmem>>, vector<1x32xf32>
    %63 = vector.broadcast %62 : vector<1x32xf32> to vector<144x32xf32>
    %64 = arith.addf %61, %63 : vector<144x32xf32>
    %cst_54 = arith.constant 0.000000e+00 : f32
    %65 = vector.broadcast %cst_54 : f32 to vector<144x32xf32>
    %66 = arith.maximumf %64, %65 : vector<144x32xf32>
    %c0_55 = arith.constant 0 : index
    %c0_56 = arith.constant 0 : index
    %67 = vector.load %arg22[%c0_55, %c0_56] : memref<32x4xbf16, #tpu.memory_space<vmem>>, vector<32x4xbf16>
    %68 = arith.truncf %66 : vector<144x32xf32> to vector<144x32xbf16>
    %cst_57 = arith.constant dense<0.000000e+00> : vector<144x4xf32>
    %69 = tpu.matmul %68, %67, %cst_57 {dimension_numbers = #tpu.dot_dimension_numbers<[1], [0], [0], [1], [0, 0, 1, 1], [], []>} : vector<144x32xbf16>, vector<32x4xbf16>, vector<144x4xf32> -> vector<144x4xf32>
    %c0_58 = arith.constant 0 : index
    %c0_59 = arith.constant 0 : index
    %70 = vector.load %arg23[%c0_58, %c0_59] : memref<1x4xf32, #tpu.memory_space<vmem>>, vector<1x4xf32>
    %71 = vector.broadcast %70 : vector<1x4xf32> to vector<144x4xf32>
    %72 = arith.addf %69, %71 : vector<144x4xf32>
    %cst_60 = arith.constant 0.000000e+00 : f32
    %73 = vector.broadcast %cst_60 : f32 to vector<144x4xf32>
    %74 = arith.cmpf ogt, %72, %73 : vector<144x4xf32>
    %cst_61 = arith.constant 1.000000e+00 : f32
    %75 = vector.broadcast %cst_61 : f32 to vector<144x4xf32>
    %76 = arith.addf %72, %75 : vector<144x4xf32>
    %77 = math.exp %72 : vector<144x4xf32>
    %78 = arith.select %74, %76, %77 : vector<144x4xi1>, vector<144x4xf32>
    %cst_62 = arith.constant dense<0.000000e+00> : vector<16x4xf32>
    %79 = tpu.matmul %3, %78, %cst_62 {dimension_numbers = #tpu.dot_dimension_numbers<[1], [0], [0], [1], [0, 0, 1, 1], [], []>} : vector<16x144xf32>, vector<144x4xf32>, vector<16x4xf32> -> vector<16x4xf32>
    %cst_63 = arith.constant 5.000000e-01 : f32
    %80 = vector.broadcast %cst_63 : f32 to vector<16x1xf32>
    %81 = arith.mulf %5, %80 : vector<16x1xf32>
    %82 = vector.broadcast %81 : vector<16x1xf32> to vector<16x4xf32>
    %83 = arith.mulf %44, %82 : vector<16x4xf32>
    %84 = arith.mulf %83, %79 : vector<16x4xf32>
    %85 = arith.addf %84, %36 : vector<16x4xf32>
    %c0_64 = arith.constant 0 : index
    %c0_65 = arith.constant 0 : index
    %86 = vector.load %arg24[%c0_64, %c0_65] : memref<16x4xf32, #tpu.memory_space<vmem>>, vector<16x4xf32>
    tpu.vector_store %arg24[%c0_64, %c0_65], %85 {strides = array<i32>} : memref<16x4xf32, #tpu.memory_space<vmem>>, vector<16x4xf32>,
    return
  }
  func.func @transform_0(%arg0: i32) -> (i32, i32) {
    %c0_i32 = arith.constant 0 : i32
    %c0_i32_0 = arith.constant 0 : i32
    %c0_i32_1 = arith.constant 0 : i32
    return %c0_i32, %c0_i32_0 : i32, i32
  }
  func.func @transform_1(%arg0: i32) -> (i32, i32) {
    %c0_i32 = arith.constant 0 : i32
    %c0_i32_0 = arith.constant 0 : i32
    %c0_i32_1 = arith.constant 0 : i32
    return %c0_i32, %c0_i32_0 : i32, i32
  }
  func.func @transform_2(%arg0: i32) -> (i32, i32) {
    %c0_i32 = arith.constant 0 : i32
    %c0_i32_0 = arith.constant 0 : i32
    %c0_i32_1 = arith.constant 0 : i32
    return %c0_i32, %c0_i32_0 : i32, i32
  }
  func.func @transform_3(%arg0: i32) -> (i32, i32) {
    %c0_i32 = arith.constant 0 : i32
    %c0_i32_0 = arith.constant 0 : i32
    %c0_i32_1 = arith.constant 0 : i32
    return %c0_i32, %c0_i32_0 : i32, i32
  }
  func.func @transform_4(%arg0: i32) -> (i32, i32) {
    %c0_i32 = arith.constant 0 : i32
    %c0_i32_0 = arith.constant 0 : i32
    %c0_i32_1 = arith.constant 0 : i32
    return %c0_i32, %c0_i32_0 : i32, i32
  }
  func.func @transform_5(%arg0: i32) -> (i32, i32) {
    %c0_i32 = arith.constant 0 : i32
    %c0_i32_0 = arith.constant 0 : i32
    %c0_i32_1 = arith.constant 0 : i32
    return %c0_i32, %c0_i32_0 : i32, i32
  }
  func.func @transform_6(%arg0: i32) -> (i32, i32) {
    %c0_i32 = arith.constant 0 : i32
    %c0_i32_0 = arith.constant 0 : i32
    %c0_i32_1 = arith.constant 0 : i32
    return %c0_i32, %c0_i32_0 : i32, i32
  }
  func.func @transform_7(%arg0: i32) -> (i32, i32) {
    %c0_i32 = arith.constant 0 : i32
    %c0_i32_0 = arith.constant 0 : i32
    %c0_i32_1 = arith.constant 0 : i32
    return %c0_i32, %c0_i32_0 : i32, i32
  }
  func.func @transform_8(%arg0: i32) -> (i32, i32) {
    %c0_i32 = arith.constant 0 : i32
    %c0_i32_0 = arith.constant 0 : i32
    %c0_i32_1 = arith.constant 0 : i32
    return %c0_i32, %c0_i32_0 : i32, i32
  }
  func.func @transform_9(%arg0: i32) -> (i32, i32) {
    %c0_i32 = arith.constant 0 : i32
    %c0_i32_0 = arith.constant 0 : i32
    %c0_i32_1 = arith.constant 0 : i32
    return %c0_i32, %c0_i32_0 : i32, i32
  }
  func.func @transform_10(%arg0: i32) -> (i32, i32) {
    %c0_i32 = arith.constant 0 : i32
    %c0_i32_0 = arith.constant 0 : i32
    %c0_i32_1 = arith.constant 0 : i32
    return %c0_i32, %c0_i32_0 : i32, i32
  }
  func.func @transform_11(%arg0: i32) -> (i32, i32) {
    %c0_i32 = arith.constant 0 : i32
    %c0_i32_0 = arith.constant 0 : i32
    %c0_i32_1 = arith.constant 0 : i32
    return %c0_i32, %c0_i32_0 : i32, i32
  }
  func.func @transform_12(%arg0: i32) -> (i32, i32) {
    %c0_i32 = arith.constant 0 : i32
    %c0_i32_0 = arith.constant 0 : i32
    %c0_i32_1 = arith.constant 0 : i32
    return %c0_i32, %c0_i32_0 : i32, i32
  }
  func.func @transform_13(%arg0: i32) -> (i32, i32) {
    %c0_i32 = arith.constant 0 : i32
    %c0_i32_0 = arith.constant 0 : i32
    %c0_i32_1 = arith.constant 0 : i32
    return %c0_i32, %c0_i32_0 : i32, i32
  }
  func.func @transform_14(%arg0: i32) -> (i32, i32) {
    %c0_i32 = arith.constant 0 : i32
    %c0_i32_0 = arith.constant 0 : i32
    %c0_i32_1 = arith.constant 0 : i32
    return %c0_i32, %c0_i32_0 : i32, i32
  }
  func.func @transform_15(%arg0: i32) -> (i32, i32) {
    %c0_i32 = arith.constant 0 : i32
    %c0_i32_0 = arith.constant 0 : i32
    %c0_i32_1 = arith.constant 0 : i32
    return %c0_i32, %c0_i32_0 : i32, i32
  }
  func.func @transform_16(%arg0: i32) -> (i32, i32) {
    %c0_i32 = arith.constant 0 : i32
    %c0_i32_0 = arith.constant 0 : i32
    %c0_i32_1 = arith.constant 0 : i32
    return %c0_i32, %c0_i32_0 : i32, i32
  }
  func.func @transform_17(%arg0: i32) -> (i32, i32) {
    %c0_i32 = arith.constant 0 : i32
    %c0_i32_0 = arith.constant 0 : i32
    %c0_i32_1 = arith.constant 0 : i32
    return %c0_i32, %c0_i32_0 : i32, i32
  }
  func.func @transform_18(%arg0: i32) -> (i32, i32) {
    %c0_i32 = arith.constant 0 : i32
    %c0_i32_0 = arith.constant 0 : i32
    %c0_i32_1 = arith.constant 0 : i32
    return %c0_i32, %c0_i32_0 : i32, i32
  }
  func.func @transform_19(%arg0: i32) -> (i32, i32) {
    %c0_i32 = arith.constant 0 : i32
    %c0_i32_0 = arith.constant 0 : i32
    %c0_i32_1 = arith.constant 0 : i32
    return %c0_i32, %c0_i32_0 : i32, i32
  }
  func.func @transform_20(%arg0: i32) -> (i32, i32) {
    %c0_i32 = arith.constant 0 : i32
    %c0_i32_0 = arith.constant 0 : i32
    %c0_i32_1 = arith.constant 0 : i32
    return %c0_i32, %c0_i32_0 : i32, i32
  }
  func.func @transform_21(%arg0: i32) -> (i32, i32) {
    %c0_i32 = arith.constant 0 : i32
    %c0_i32_0 = arith.constant 0 : i32
    %c0_i32_1 = arith.constant 0 : i32
    return %c0_i32, %c0_i32_0 : i32, i32
  }
  func.func @transform_22(%arg0: i32) -> (i32, i32) {
    %c0_i32 = arith.constant 0 : i32
    %c0_i32_0 = arith.constant 0 : i32
    %c0_i32_1 = arith.constant 0 : i32
    return %c0_i32, %c0_i32_0 : i32, i32
  }
  func.func @transform_23(%arg0: i32) -> (i32, i32) {
    %c0_i32 = arith.constant 0 : i32
    %c0_i32_0 = arith.constant 0 : i32
    %c0_i32_1 = arith.constant 0 : i32
    return %c0_i32, %c0_i32_0 : i32, i32
  }
}

module attributes {stable_mosaic.version = 11 : i64} {
  func.func @_matmul_bias_relu_kernel(%arg0: i32, %arg1: memref<8x576xf32, #tpu.memory_space<vmem>>, %arg2: memref<576x64xbf16, #tpu.memory_space<vmem>>, %arg3: memref<1x64xf32, #tpu.memory_space<vmem>>, %arg4: memref<8x64xf32, #tpu.memory_space<vmem>>) attributes {dimension_semantics = [#tpu.dimension_semantics<arbitrary>], iteration_bounds = array<i64: 1>, scalar_prefetch = 0 : i64, scratch_operands = 0 : i64, tpu.core_type = #tpu.core_type<tc>, window_params = [{pipeline_mode = #tpu.pipeline_mode<synchronous>, transform_indices = @transform_0, window_bounds = array<i64: 8, 576>}, {pipeline_mode = #tpu.pipeline_mode<synchronous>, transform_indices = @transform_1, window_bounds = array<i64: 576, 64>}, {pipeline_mode = #tpu.pipeline_mode<synchronous>, transform_indices = @transform_2, window_bounds = array<i64: 1, 64>}, {pipeline_mode = #tpu.pipeline_mode<synchronous>, transform_indices = @transform_3, window_bounds = array<i64: 8, 64>}]} {
    %c0 = arith.constant 0 : index
    %c0_0 = arith.constant 0 : index
    %0 = vector.load %arg1[%c0, %c0_0] : memref<8x576xf32, #tpu.memory_space<vmem>>, vector<8x576xf32>
    %1 = arith.truncf %0 : vector<8x576xf32> to vector<8x576xbf16>
    %c0_1 = arith.constant 0 : index
    %c0_2 = arith.constant 0 : index
    %2 = vector.load %arg2[%c0_1, %c0_2] : memref<576x64xbf16, #tpu.memory_space<vmem>>, vector<576x64xbf16>
    %cst = arith.constant dense<0.000000e+00> : vector<8x64xf32>
    %3 = tpu.matmul %1, %2, %cst {dimension_numbers = #tpu.dot_dimension_numbers<[1], [0], [0], [1], [0, 0, 1, 1], [], []>} : vector<8x576xbf16>, vector<576x64xbf16>, vector<8x64xf32> -> vector<8x64xf32>
    %c0_3 = arith.constant 0 : index
    %c0_4 = arith.constant 0 : index
    %4 = vector.load %arg3[%c0_3, %c0_4] : memref<1x64xf32, #tpu.memory_space<vmem>>, vector<1x64xf32>
    %5 = vector.broadcast %4 : vector<1x64xf32> to vector<8x64xf32>
    %6 = arith.addf %3, %5 : vector<8x64xf32>
    %cst_5 = arith.constant 0.000000e+00 : f32
    %7 = vector.broadcast %cst_5 : f32 to vector<8x64xf32>
    %8 = arith.maximumf %6, %7 : vector<8x64xf32>
    %c0_6 = arith.constant 0 : index
    %c0_7 = arith.constant 0 : index
    %9 = vector.load %arg4[%c0_6, %c0_7] : memref<8x64xf32, #tpu.memory_space<vmem>>, vector<8x64xf32>
    tpu.vector_store %arg4[%c0_6, %c0_7], %8 {strides = array<i32>} : memref<8x64xf32, #tpu.memory_space<vmem>>, vector<8x64xf32>,
    return
  }
  func.func @transform_0(%arg0: i32) -> (i32, i32) {
    %c0_i32 = arith.constant 0 : i32
    %c0_i32_0 = arith.constant 0 : i32
    %c0_i32_1 = arith.constant 0 : i32
    return %c0_i32, %c0_i32_0 : i32, i32
  }
  func.func @transform_1(%arg0: i32) -> (i32, i32) {
    %c0_i32 = arith.constant 0 : i32
    %c0_i32_0 = arith.constant 0 : i32
    %c0_i32_1 = arith.constant 0 : i32
    return %c0_i32, %c0_i32_0 : i32, i32
  }
  func.func @transform_2(%arg0: i32) -> (i32, i32) {
    %c0_i32 = arith.constant 0 : i32
    %c0_i32_0 = arith.constant 0 : i32
    %c0_i32_1 = arith.constant 0 : i32
    return %c0_i32, %c0_i32_0 : i32, i32
  }
  func.func @transform_3(%arg0: i32) -> (i32, i32) {
    %c0_i32 = arith.constant 0 : i32
    %c0_i32_0 = arith.constant 0 : i32
    %c0_i32_1 = arith.constant 0 : i32
    return %c0_i32, %c0_i32_0 : i32, i32
  }
}

</mosaic_0001>

<llo_original>
// kernel: forward.4
$region0: #{forward.4}
  #allocation0 [shape = 'u32[]', space=smem, size = 0x4, offset = 0x4, fixed_abs, tag = 'smem constant byte address 0x4 - core index']
  #allocation1 [shape = 'u32[72,128]{1,0:T(1,128)}', space=vmem, size = 0x9000, scoped, tag = 'internal scratch']
  %s0 = inlined_call_operand.vmem [shape: f32[200,256], index: 0, kind: input, shape index: {}]
  %s1 = inlined_call_operand.vmem [shape: bf16[256,32], index: 1, kind: input, shape index: {}]
  %s2 = inlined_call_operand.vmem [shape: f32[1,32], index: 2, kind: input, shape index: {}]
  %s3 = inlined_call_operand.vmem [shape: f32[200,32], index: 3, kind: output, shape index: {}]
  %s4 = sld [smem:[#allocation0]]
  $region22: #{forward.4} parent=0
    _
  %s6 = ssub.s32 1, %s4
  %s7 = scalar_select 0, %s6, %s4
  // Predicated region
  $region2: #{forward.4} parent=0 // pred_check
    _
  $region3: #{forward.4} parent=0 // pred_check_branch
    %9 = sbr.rel (0) target = $region5
  $region4: #{forward.4} parent=0 // pred_region
    _
  $region5: #{forward.4} parent=0 // pred_fallthru
    _
  // Predicated region
  $region6: #{forward.4} parent=0 // pred_check
    _
  $region7: #{forward.4} parent=0 // pred_check_branch
    %11 = sbr.rel (0) target = $region9
  $region8: #{forward.4} parent=0 // pred_region
    _
  $region9: #{forward.4} parent=0 // pred_fallthru
    _
  // Predicated region
  $region10: #{forward.4} parent=0 // pred_check
    _
  $region11: #{forward.4} parent=0 // pred_check_branch
    %13 = sbr.rel (0) target = $region13
  $region12: #{forward.4} parent=0 // pred_region
    _
  $region13: #{forward.4} parent=0 // pred_fallthru
    _
  %v14 = vld [vmem:[%s0] sm:$0xff]
  %v15 = vld [vmem:[%s0 + $0x8] sm:$0xff]
  %v16 = vld [vmem:[%s0 + $0x10] sm:$0xff]
  %v17 = vld [vmem:[%s0 + $0x18] sm:$0xff]
  %v18 = vld [vmem:[%s0 + $0x20] sm:$0xff]
  %v19 = vld [vmem:[%s0 + $0x28] sm:$0xff]
  %v20 = vld [vmem:[%s0 + $0x30] sm:$0xff]
  %v21 = vld [vmem:[%s0 + $0x38] sm:$0xff]
  %v22 = vld [vmem:[%s0 + $0x40] sm:$0xff]
  %v23 = vld [vmem:[%s0 + $0x48] sm:$0xff]
  %v24 = vld [vmem:[%s0 + $0x50] sm:$0xff]
  %v25 = vld [vmem:[%s0 + $0x58] sm:$0xff]
  %v26 = vld [vmem:[%s0 + $0x60] sm:$0xff]
  %v27 = vld [vmem:[%s0 + $0x68] sm:$0xff]
  %v28 = vld [vmem:[%s0 + $0x70] sm:$0xff]
  %v29 = vld [vmem:[%s0 + $0x78] sm:$0xff]
  %v30 = vld [vmem:[%s0 + $0x80] sm:$0xff]
  %v31 = vld [vmem:[%s0 + $0x88] sm:$0xff]
  %v32 = vld [vmem:[%s0 + $0x90] sm:$0xff]
  %v33 = vld [vmem:[%s0 + $0x98] sm:$0xff]
  %v34 = vld [vmem:[%s0 + $0xa0] sm:$0xff]
  %v35 = vld [vmem:[%s0 + $0xa8] sm:$0xff]
  %v36 = vld [vmem:[%s0 + $0xb0] sm:$0xff]
  %v37 = vld [vmem:[%s0 + $0xb8] sm:$0xff]
  %v38 = vld [vmem:[%s0 + $0xc0] sm:$0xff]
  %v39 = vld [vmem:[%s0 + $0xc8] sm:$0xff]
  %v40 = vld [vmem:[%s0 + $0xd0] sm:$0xff]
  %v41 = vld [vmem:[%s0 + $0xd8] sm:$0xff]
  %v42 = vld [vmem:[%s0 + $0xe0] sm:$0xff]
  %v43 = vld [vmem:[%s0 + $0xe8] sm:$0xff]
  %v44 = vld [vmem:[%s0 + $0xf0] sm:$0xff]
  %v45 = vld [vmem:[%s0 + $0xf8] sm:$0xff]
  %v46 = vld [vmem:[%s0 + $0x100] sm:$0xff]
  %v47 = vld [vmem:[%s0 + $0x108] sm:$0xff]
  %v48 = vld [vmem:[%s0 + $0x110] sm:$0xff]
  %v49 = vld [vmem:[%s0 + $0x118] sm:$0xff]
  %v50 = vld [vmem:[%s0 + $0x120] sm:$0xff]
  %v51 = vld [vmem:[%s0 + $0x128] sm:$0xff]
  %v52 = vld [vmem:[%s0 + $0x130] sm:$0xff]
  %v53 = vld [vmem:[%s0 + $0x138] sm:$0xff]
  %v54 = vld [vmem:[%s0 + $0x140] sm:$0xff]
  %v55 = vld [vmem:[%s0 + $0x148] sm:$0xff]
  %v56 = vld [vmem:[%s0 + $0x150] sm:$0xff]
  %v57 = vld [vmem:[%s0 + $0x158] sm:$0xff]
  %v58 = vld [vmem:[%s0 + $0x160] sm:$0xff]
  %v59 = vld [vmem:[%s0 + $0x168] sm:$0xff]
  %v60 = vld [vmem:[%s0 + $0x170] sm:$0xff]
  %v61 = vld [vmem:[%s0 + $0x178] sm:$0xff]
  %v62 = vld [vmem:[%s0 + $0x180] sm:$0xff]
  %v63 = vld [vmem:[%s0 + $0x188] sm:$0xff]
  %v64 = vpack.c.bf16 %v16, %v14
  %v65 = vpack.c.bf16 %v17, %v15
  %v66 = vpack.c.bf16 %v20, %v18
  %v67 = vpack.c.bf16 %v21, %v19
  %v68 = vpack.c.bf16 %v24, %v22
  %v69 = vpack.c.bf16 %v25, %v23
  %v70 = vpack.c.bf16 %v28, %v26
  %v71 = vpack.c.bf16 %v29, %v27
  %v72 = vpack.c.bf16 %v32, %v30
  %v73 = vpack.c.bf16 %v33, %v31
  %v74 = vpack.c.bf16 %v36, %v34
  %v75 = vpack.c.bf16 %v37, %v35
  %v76 = vpack.c.bf16 %v40, %v38
  %v77 = vpack.c.bf16 %v41, %v39
  %v78 = vpack.c.bf16 %v44, %v42
  %v79 = vpack.c.bf16 %v45, %v43
  %v80 = vpack.c.bf16 %v48, %v46
  %v81 = vpack.c.bf16 %v49, %v47
  %v82 = vpack.c.bf16 %v52, %v50
  %v83 = vpack.c.bf16 %v53, %v51
  %v84 = vpack.c.bf16 %v56, %v54
  %v85 = vpack.c.bf16 %v57, %v55
  %v86 = vpack.c.bf16 %v60, %v58
  %v87 = vpack.c.bf16 %v61, %v59
  %v88 = vpack.c.bf16 %v62, %v62
  %v89 = vpack.c.bf16 %v63, %v63
  %v90 = vld [vmem:[%s1] sm:$0xf]
  %v91 = vld [vmem:[%s1 + $0x4] sm:$0xf]
  %v92 = vld [vmem:[%s1 + $0x8] sm:$0xf]
  %v93 = vld [vmem:[%s1 + $0xc] sm:$0xf]
  %v94 = vld [vmem:[%s1 + $0x10] sm:$0xf]
  %v95 = vld [vmem:[%s1 + $0x14] sm:$0xf]
  %v96 = vld [vmem:[%s1 + $0x18] sm:$0xf]
  %v97 = vld [vmem:[%s1 + $0x1c] sm:$0xf]
  %v98 = vld [vmem:[%s1 + $0x20] sm:$0xf]
  %v99 = vld [vmem:[%s1 + $0x24] sm:$0xf]
  %v100 = vld [vmem:[%s1 + $0x28] sm:$0xf]
  %v101 = vld [vmem:[%s1 + $0x2c] sm:$0xf]
  %v102 = vld [vmem:[%s1 + $0x30] sm:$0xf]
  %v103 = vld [vmem:[%s1 + $0x34] sm:$0xf]
  %v104 = vld [vmem:[%s1 + $0x38] sm:$0xf]
  %v105 = vld [vmem:[%s1 + $0x3c] sm:$0xf]
  %v106 = vld [vmem:[%s1 + $0x40] sm:$0xf]
  %v107 = vld [vmem:[%s1 + $0x44] sm:$0xf]
  %v108 = vld [vmem:[%s1 + $0x48] sm:$0xf]
  %v109 = vld [vmem:[%s1 + $0x4c] sm:$0xf]
  %v110 = vld [vmem:[%s1 + $0x50] sm:$0xf]
  %v111 = vld [vmem:[%s1 + $0x54] sm:$0xf]
  %v112 = vld [vmem:[%s1 + $0x58] sm:$0xf]
  %v113 = vld [vmem:[%s1 + $0x5c] sm:$0xf]
  %v114 = vld [vmem:[%s1 + $0x60] sm:$0xf]
  %v115 = vld [vmem:[%s1 + $0x64] sm:$0xf]
  %v116 = vld [vmem:[%s1 + $0x68] sm:$0xf]
  %v117 = vld [vmem:[%s1 + $0x6c] sm:$0xf]
  %v118 = vld [vmem:[%s1 + $0x70] sm:$0xf]
  %v119 = vld [vmem:[%s1 + $0x74] sm:$0xf]
  %v120 = vld [vmem:[%s1 + $0x78] sm:$0xf]
  %v121 = vld [vmem:[%s1 + $0x7c] sm:$0xf]
  %v122 = vld [vmem:[%s2] sm:$0x1]
  %v124 = vperm.slane %v122, 0
  %v158 = vunpack.c.l.b16 %v90
  %v159 = vunpack.c.l.b16 %v91
  %v160 = vunpack.c.l.b16 %v92
  %v161 = vunpack.c.l.b16 %v93
  %v162 = vunpack.c.l.b16 %v94
  %v163 = vunpack.c.l.b16 %v95
  %v164 = vunpack.c.l.b16 %v96
  %v165 = vunpack.c.l.b16 %v97
  %v166 = vunpack.c.l.b16 %v98
  %v167 = vunpack.c.l.b16 %v99
  %v168 = vunpack.c.l.b16 %v100
  %v169 = vunpack.c.l.b16 %v101
  %v170 = vunpack.c.l.b16 %v102
  %v171 = vunpack.c.l.b16 %v103
  %v172 = vunpack.c.l.b16 %v104
  %v173 = vunpack.c.l.b16 %v105
  %v174 = vunpack.c.l.b16 %v106
  %v175 = vunpack.c.l.b16 %v107
  %v176 = vunpack.c.l.b16 %v108
  %v177 = vunpack.c.l.b16 %v109
  %v178 = vunpack.c.l.b16 %v110
  %v179 = vunpack.c.l.b16 %v111
  %v180 = vunpack.c.l.b16 %v112
  %v181 = vunpack.c.l.b16 %v113
  %v182 = vunpack.c.l.b16 %v114
  %v183 = vunpack.c.l.b16 %v115
  %v184 = vunpack.c.l.b16 %v116
  %v185 = vunpack.c.l.b16 %v117
  %v186 = vunpack.c.l.b16 %v118
  %v187 = vunpack.c.l.b16 %v119
  %v188 = vunpack.c.l.b16 %v120
  %v189 = vunpack.c.l.b16 %v121
  %v190 = vpack.c.b16 %v159, %v158
  %v191 = vpack.c.b16 %v161, %v160
  %v192 = vpack.c.b16 %v163, %v162
  %v193 = vpack.c.b16 %v165, %v164
  %v194 = vpack.c.b16 %v167, %v166
  %v195 = vpack.c.b16 %v169, %v168
  %v196 = vpack.c.b16 %v171, %v170
  %v197 = vpack.c.b16 %v173, %v172
  %v198 = vpack.c.b16 %v175, %v174
  %v199 = vpack.c.b16 %v177, %v176
  %v200 = vpack.c.b16 %v179, %v178
  %v201 = vpack.c.b16 %v181, %v180
  %v202 = vpack.c.b16 %v183, %v182
  %v203 = vpack.c.b16 %v185, %v184
  %v204 = vpack.c.b16 %v187, %v186
  %v205 = vpack.c.b16 %v189, %v188
  %222 = vmatpush.bf16.msra.mxu0 %v197
  %223 = vmatpush.bf16.msra.mxu0 %v196
  %224 = vmatpush.bf16.msra.mxu0 %v195
  %225 = vmatpush.bf16.msra.mxu0 %v194
  %226 = vmatpush.bf16.msra.mxu0 %v193
  %227 = vmatpush.bf16.msra.mxu0 %v192
  %228 = vmatpush.bf16.msra.mxu0 %v191
  %229 = vmatpush.bf16.msra.mxu0 %v190
  %230 = vmatmul.bf16.gmra.mxu0 %v64
  %v231 = vpop.f32.mrf.mxu0
  %v232 = vadd.f32 %v124, %v231
  %v233 = vpop.f32.mrf.mxu0
  %v234 = vadd.f32 %v124, %v233
  %235 = vmatmul.bf16.gmra.mxu0 %v66
  %v236 = vpop.f32.mrf.mxu0
  %v237 = vadd.f32 %v124, %v236
  %v238 = vpop.f32.mrf.mxu0
  %v239 = vadd.f32 %v124, %v238
  %240 = vmatmul.bf16.gmra.mxu0 %v68
  %v241 = vpop.f32.mrf.mxu0
  %v242 = vadd.f32 %v124, %v241
  %v243 = vpop.f32.mrf.mxu0
  %v244 = vadd.f32 %v124, %v243
  %245 = vmatmul.bf16.gmra.mxu0 %v70
  %v246 = vpop.f32.mrf.mxu0
  %v247 = vadd.f32 %v124, %v246
  %v248 = vpop.f32.mrf.mxu0
  %v249 = vadd.f32 %v124, %v248
  %250 = vmatmul.bf16.gmra.mxu0 %v72
  %v251 = vpop.f32.mrf.mxu0
  %v252 = vadd.f32 %v124, %v251
  %v253 = vpop.f32.mrf.mxu0
  %v254 = vadd.f32 %v124, %v253
  %255 = vmatmul.bf16.gmra.mxu0 %v74
  %v256 = vpop.f32.mrf.mxu0
  %v257 = vadd.f32 %v124, %v256
  %v258 = vpop.f32.mrf.mxu0
  %v259 = vadd.f32 %v124, %v258
  %260 = vmatmul.bf16.gmra.mxu0 %v76
  %v261 = vpop.f32.mrf.mxu0
  %v262 = vadd.f32 %v124, %v261
  %v263 = vpop.f32.mrf.mxu0
  %v264 = vadd.f32 %v124, %v263
  %265 = vmatmul.bf16.gmra.mxu0 %v78
  %v266 = vpop.f32.mrf.mxu0
  %v267 = vadd.f32 %v124, %v266
  %v268 = vpop.f32.mrf.mxu0
  %v269 = vadd.f32 %v124, %v268
  %270 = vmatmul.bf16.gmra.mxu0 %v80
  %v271 = vpop.f32.mrf.mxu0
  %v272 = vadd.f32 %v124, %v271
  %v273 = vpop.f32.mrf.mxu0
  %v274 = vadd.f32 %v124, %v273
  %275 = vmatmul.bf16.gmra.mxu0 %v82
  %v276 = vpop.f32.mrf.mxu0
  %v277 = vadd.f32 %v124, %v276
  %v278 = vpop.f32.mrf.mxu0
  %v279 = vadd.f32 %v124, %v278
  %280 = vmatmul.bf16.gmra.mxu0 %v84
  %v281 = vpop.f32.mrf.mxu0
  %v282 = vadd.f32 %v124, %v281
  %v283 = vpop.f32.mrf.mxu0
  %v284 = vadd.f32 %v124, %v283
  %285 = vmatmul.bf16.gmra.mxu0 %v86
  %v286 = vpop.f32.mrf.mxu0
  %v287 = vadd.f32 %v124, %v286
  %v288 = vpop.f32.mrf.mxu0
  %v289 = vadd.f32 %v124, %v288
  %290 = vmatmul.bf16.gmra.mxu0 %v88
  %v291 = vpop.f32.mrf.mxu0
  %v292 = vadd.f32 %v124, %v291
  %v293 = vpop.f32.mrf.mxu0
  %294 = vdwg.mxu0
  %295 = vmatpush.bf16.msra.mxu0 %v205
  %296 = vmatpush.bf16.msra.mxu0 %v204
  %297 = vmatpush.bf16.msra.mxu0 %v203
  %298 = vmatpush.bf16.msra.mxu0 %v202
  %299 = vmatpush.bf16.msra.mxu0 %v201
  %300 = vmatpush.bf16.msra.mxu0 %v200
  %301 = vmatpush.bf16.msra.mxu0 %v199
  %302 = vmatpush.bf16.msra.mxu0 %v198
  %303 = vmatmul.bf16.gmra.mxu0 %v65
  %v304 = vpop.f32.mrf.mxu0
  %v305 = vadd.f32 %v232, %v304
  %v306 = vpop.f32.mrf.mxu0
  %v307 = vadd.f32 %v234, %v306
  %308 = vmatmul.bf16.gmra.mxu0 %v67
  %v309 = vpop.f32.mrf.mxu0
  %v310 = vadd.f32 %v237, %v309
  %v311 = vpop.f32.mrf.mxu0
  %v312 = vadd.f32 %v239, %v311
  %313 = vmatmul.bf16.gmra.mxu0 %v69
  %v314 = vpop.f32.mrf.mxu0
  %v315 = vadd.f32 %v242, %v314
  %v316 = vpop.f32.mrf.mxu0
  %v317 = vadd.f32 %v244, %v316
  %318 = vmatmul.bf16.gmra.mxu0 %v71
  %v319 = vpop.f32.mrf.mxu0
  %v320 = vadd.f32 %v247, %v319
  %v321 = vpop.f32.mrf.mxu0
  %v322 = vadd.f32 %v249, %v321
  %323 = vmatmul.bf16.gmra.mxu0 %v73
  %v324 = vpop.f32.mrf.mxu0
  %v325 = vadd.f32 %v252, %v324
  %v326 = vpop.f32.mrf.mxu0
  %v327 = vadd.f32 %v254, %v326
  %328 = vmatmul.bf16.gmra.mxu0 %v75
  %v329 = vpop.f32.mrf.mxu0
  %v330 = vadd.f32 %v257, %v329
  %v331 = vpop.f32.mrf.mxu0
  %v332 = vadd.f32 %v259, %v331
  %333 = vmatmul.bf16.gmra.mxu0 %v77
  %v334 = vpop.f32.mrf.mxu0
  %v335 = vadd.f32 %v262, %v334
  %v336 = vpop.f32.mrf.mxu0
  %v337 = vadd.f32 %v264, %v336
  %338 = vmatmul.bf16.gmra.mxu0 %v79
  %v339 = vpop.f32.mrf.mxu0
  %v340 = vadd.f32 %v267, %v339
  %v341 = vpop.f32.mrf.mxu0
  %v342 = vadd.f32 %v269, %v341
  %343 = vmatmul.bf16.gmra.mxu0 %v81
  %v344 = vpop.f32.mrf.mxu0
  %v345 = vadd.f32 %v272, %v344
  %v346 = vpop.f32.mrf.mxu0
  %v347 = vadd.f32 %v274, %v346
  %348 = vmatmul.bf16.gmra.mxu0 %v83
  %v349 = vpop.f32.mrf.mxu0
  %v350 = vadd.f32 %v277, %v349
  %v351 = vpop.f32.mrf.mxu0
  %v352 = vadd.f32 %v279, %v351
  %353 = vmatmul.bf16.gmra.mxu0 %v85
  %v354 = vpop.f32.mrf.mxu0
  %v355 = vadd.f32 %v282, %v354
  %v356 = vpop.f32.mrf.mxu0
  %v357 = vadd.f32 %v284, %v356
  %358 = vmatmul.bf16.gmra.mxu0 %v87
  %v359 = vpop.f32.mrf.mxu0
  %v360 = vadd.f32 %v287, %v359
  %v361 = vpop.f32.mrf.mxu0
  %v362 = vadd.f32 %v289, %v361
  %363 = vmatmul.bf16.gmra.mxu0 %v89
  %v364 = vpop.f32.mrf.mxu0
  %v365 = vadd.f32 %v292, %v364
  %v366 = vpop.f32.mrf.mxu0
  %367 = vdwg.mxu0
  %v368 = vmax.f32 %v305, 0.0
  %v369 = vmax.f32 %v307, 0.0
  %v370 = vmax.f32 %v310, 0.0
  %v371 = vmax.f32 %v312, 0.0
  %v372 = vmax.f32 %v315, 0.0
  %v373 = vmax.f32 %v317, 0.0
  %v374 = vmax.f32 %v320, 0.0
  %v375 = vmax.f32 %v322, 0.0
  %v376 = vmax.f32 %v325, 0.0
  %v377 = vmax.f32 %v327, 0.0
  %v378 = vmax.f32 %v330, 0.0
  %v379 = vmax.f32 %v332, 0.0
  %v380 = vmax.f32 %v335, 0.0
  %v381 = vmax.f32 %v337, 0.0
  %v382 = vmax.f32 %v340, 0.0
  %v383 = vmax.f32 %v342, 0.0
  %v384 = vmax.f32 %v345, 0.0
  %v385 = vmax.f32 %v347, 0.0
  %v386 = vmax.f32 %v350, 0.0
  %v387 = vmax.f32 %v352, 0.0
  %v388 = vmax.f32 %v355, 0.0
  %v389 = vmax.f32 %v357, 0.0
  %v390 = vmax.f32 %v360, 0.0
  %v391 = vmax.f32 %v362, 0.0
  %v392 = vmax.f32 %v365, 0.0
  %vm393 = vcmask 261120
  %394 = vst.msk [vmem:[%s3] sm:$0xff] %vm393, %v368
  %395 = vst.msk [vmem:[%s3 + $0x8] sm:$0xff] %vm393, %v369
  %396 = vst.msk [vmem:[%s3 + $0x10] sm:$0xff] %vm393, %v370
  %397 = vst.msk [vmem:[%s3 + $0x18] sm:$0xff] %vm393, %v371
  %398 = vst.msk [vmem:[%s3 + $0x20] sm:$0xff] %vm393, %v372
  %399 = vst.msk [vmem:[%s3 + $0x28] sm:$0xff] %vm393, %v373
  %400 = vst.msk [vmem:[%s3 + $0x30] sm:$0xff] %vm393, %v374
  %401 = vst.msk [vmem:[%s3 + $0x38] sm:$0xff] %vm393, %v375
  %402 = vst.msk [vmem:[%s3 + $0x40] sm:$0xff] %vm393, %v376
  %403 = vst.msk [vmem:[%s3 + $0x48] sm:$0xff] %vm393, %v377
  %404 = vst.msk [vmem:[%s3 + $0x50] sm:$0xff] %vm393, %v378
  %405 = vst.msk [vmem:[%s3 + $0x58] sm:$0xff] %vm393, %v379
  %406 = vst.msk [vmem:[%s3 + $0x60] sm:$0xff] %vm393, %v380
  %407 = vst.msk [vmem:[%s3 + $0x68] sm:$0xff] %vm393, %v381
  %408 = vst.msk [vmem:[%s3 + $0x70] sm:$0xff] %vm393, %v382
  %409 = vst.msk [vmem:[%s3 + $0x78] sm:$0xff] %vm393, %v383
  %410 = vst.msk [vmem:[%s3 + $0x80] sm:$0xff] %vm393, %v384
  %411 = vst.msk [vmem:[%s3 + $0x88] sm:$0xff] %vm393, %v385
  %412 = vst.msk [vmem:[%s3 + $0x90] sm:$0xff] %vm393, %v386
  %413 = vst.msk [vmem:[%s3 + $0x98] sm:$0xff] %vm393, %v387
  %414 = vst.msk [vmem:[%s3 + $0xa0] sm:$0xff] %vm393, %v388
  %415 = vst.msk [vmem:[%s3 + $0xa8] sm:$0xff] %vm393, %v389
  %416 = vst.msk [vmem:[%s3 + $0xb0] sm:$0xff] %vm393, %v390
  %417 = vst.msk [vmem:[%s3 + $0xb8] sm:$0xff] %vm393, %v391
  %418 = vst.msk [vmem:[%s3 + $0xc0] sm:$0xff] %vm393, %v392
  // Predicated region
  $region14: #{forward.4} parent=0 // pred_check
    _
  $region15: #{forward.4} parent=0 // pred_check_branch
    %420 = sbr.rel (0) target = $region17
  $region16: #{forward.4} parent=0 // pred_region
    _
  $region17: #{forward.4} parent=0 // pred_fallthru
    _
  // Predicated region
  $region18: #{forward.4} parent=0 // pred_check
    _
  $region19: #{forward.4} parent=0 // pred_check_branch
    %422 = sbr.rel (0) target = $region21
  $region20: #{forward.4} parent=0 // pred_region
    _
  $region21: #{forward.4} parent=0 // pred_fallthru
    _

// kernel: forward.5
$region0: #{forward.5}
  #allocation0 [shape = 'u32[]', space=smem, size = 0x4, offset = 0x4, fixed_abs, tag = 'smem constant byte address 0x4 - core index']
  #allocation1 [shape = 'u32[72,128]{1,0:T(1,128)}', space=vmem, size = 0x9000, scoped, tag = 'internal scratch']
  %s0 = inlined_call_operand.vmem [shape: f32[32,512], index: 0, kind: input, shape index: {}]
  %s1 = inlined_call_operand.vmem [shape: bf16[512,64], index: 1, kind: input, shape index: {}]
  %s2 = inlined_call_operand.vmem [shape: f32[1,64], index: 2, kind: input, shape index: {}]
  %s3 = inlined_call_operand.vmem [shape: f32[32,64], index: 3, kind: output, shape index: {}]
  %s4 = sld [smem:[#allocation0]]
  $region22: #{forward.5} parent=0
    _
  %s6 = ssub.s32 1, %s4
  %s7 = scalar_select 0, %s6, %s4
  // Predicated region
  $region2: #{forward.5} parent=0 // pred_check
    _
  $region3: #{forward.5} parent=0 // pred_check_branch
    %9 = sbr.rel (0) target = $region5
  $region4: #{forward.5} parent=0 // pred_region
    _
  $region5: #{forward.5} parent=0 // pred_fallthru
    _
  // Predicated region
  $region6: #{forward.5} parent=0 // pred_check
    _
  $region7: #{forward.5} parent=0 // pred_check_branch
    %11 = sbr.rel (0) target = $region9
  $region8: #{forward.5} parent=0 // pred_region
    _
  $region9: #{forward.5} parent=0 // pred_fallthru
    _
  // Predicated region
  $region10: #{forward.5} parent=0 // pred_check
    _
  $region11: #{forward.5} parent=0 // pred_check_branch
    %13 = sbr.rel (0) target = $region13
  $region12: #{forward.5} parent=0 // pred_region
    _
  $region13: #{forward.5} parent=0 // pred_fallthru
    _
  %v14 = vld [vmem:[%s0] sm:$0xff]
  %v15 = vld [vmem:[%s0 + $0x8] sm:$0xff]
  %v16 = vld [vmem:[%s0 + $0x10] sm:$0xff]
  %v17 = vld [vmem:[%s0 + $0x18] sm:$0xff]
  %v18 = vld [vmem:[%s0 + $0x20] sm:$0xff]
  %v19 = vld [vmem:[%s0 + $0x28] sm:$0xff]
  %v20 = vld [vmem:[%s0 + $0x30] sm:$0xff]
  %v21 = vld [vmem:[%s0 + $0x38] sm:$0xff]
  %v22 = vld [vmem:[%s0 + $0x40] sm:$0xff]
  %v23 = vld [vmem:[%s0 + $0x48] sm:$0xff]
  %v24 = vld [vmem:[%s0 + $0x50] sm:$0xff]
  %v25 = vld [vmem:[%s0 + $0x58] sm:$0xff]
  %v26 = vld [vmem:[%s0 + $0x60] sm:$0xff]
  %v27 = vld [vmem:[%s0 + $0x68] sm:$0xff]
  %v28 = vld [vmem:[%s0 + $0x70] sm:$0xff]
  %v29 = vld [vmem:[%s0 + $0x78] sm:$0xff]
  %v30 = vpack.c.bf16 %v18, %v14
  %v31 = vpack.c.bf16 %v19, %v15
  %v32 = vpack.c.bf16 %v20, %v16
  %v33 = vpack.c.bf16 %v21, %v17
  %v34 = vpack.c.bf16 %v26, %v22
  %v35 = vpack.c.bf16 %v27, %v23
  %v36 = vpack.c.bf16 %v28, %v24
  %v37 = vpack.c.bf16 %v29, %v25
  %v38 = vld [vmem:[%s1] sm:$0xf]
  %v39 = vld [vmem:[%s1 + $0x4] sm:$0xf]
  %v40 = vld [vmem:[%s1 + $0x8] sm:$0xf]
  %v41 = vld [vmem:[%s1 + $0xc] sm:$0xf]
  %v42 = vld [vmem:[%s1 + $0x10] sm:$0xf]
  %v43 = vld [vmem:[%s1 + $0x14] sm:$0xf]
  %v44 = vld [vmem:[%s1 + $0x18] sm:$0xf]
  %v45 = vld [vmem:[%s1 + $0x1c] sm:$0xf]
  %v46 = vld [vmem:[%s1 + $0x20] sm:$0xf]
  %v47 = vld [vmem:[%s1 + $0x24] sm:$0xf]
  %v48 = vld [vmem:[%s1 + $0x28] sm:$0xf]
  %v49 = vld [vmem:[%s1 + $0x2c] sm:$0xf]
  %v50 = vld [vmem:[%s1 + $0x30] sm:$0xf]
  %v51 = vld [vmem:[%s1 + $0x34] sm:$0xf]
  %v52 = vld [vmem:[%s1 + $0x38] sm:$0xf]
  %v53 = vld [vmem:[%s1 + $0x3c] sm:$0xf]
  %v54 = vld [vmem:[%s1 + $0x40] sm:$0xf]
  %v55 = vld [vmem:[%s1 + $0x44] sm:$0xf]
  %v56 = vld [vmem:[%s1 + $0x48] sm:$0xf]
  %v57 = vld [vmem:[%s1 + $0x4c] sm:$0xf]
  %v58 = vld [vmem:[%s1 + $0x50] sm:$0xf]
  %v59 = vld [vmem:[%s1 + $0x54] sm:$0xf]
  %v60 = vld [vmem:[%s1 + $0x58] sm:$0xf]
  %v61 = vld [vmem:[%s1 + $0x5c] sm:$0xf]
  %v62 = vld [vmem:[%s1 + $0x60] sm:$0xf]
  %v63 = vld [vmem:[%s1 + $0x64] sm:$0xf]
  %v64 = vld [vmem:[%s1 + $0x68] sm:$0xf]
  %v65 = vld [vmem:[%s1 + $0x6c] sm:$0xf]
  %v66 = vld [vmem:[%s1 + $0x70] sm:$0xf]
  %v67 = vld [vmem:[%s1 + $0x74] sm:$0xf]
  %v68 = vld [vmem:[%s1 + $0x78] sm:$0xf]
  %v69 = vld [vmem:[%s1 + $0x7c] sm:$0xf]
  %v70 = vld [vmem:[%s1 + $0x80] sm:$0xf]
  %v71 = vld [vmem:[%s1 + $0x84] sm:$0xf]
  %v72 = vld [vmem:[%s1 + $0x88] sm:$0xf]
  %v73 = vld [vmem:[%s1 + $0x8c] sm:$0xf]
  %v74 = vld [vmem:[%s1 + $0x90] sm:$0xf]
  %v75 = vld [vmem:[%s1 + $0x94] sm:$0xf]
  %v76 = vld [vmem:[%s1 + $0x98] sm:$0xf]
  %v77 = vld [vmem:[%s1 + $0x9c] sm:$0xf]
  %v78 = vld [vmem:[%s1 + $0xa0] sm:$0xf]
  %v79 = vld [vmem:[%s1 + $0xa4] sm:$0xf]
  %v80 = vld [vmem:[%s1 + $0xa8] sm:$0xf]
  %v81 = vld [vmem:[%s1 + $0xac] sm:$0xf]
  %v82 = vld [vmem:[%s1 + $0xb0] sm:$0xf]
  %v83 = vld [vmem:[%s1 + $0xb4] sm:$0xf]
  %v84 = vld [vmem:[%s1 + $0xb8] sm:$0xf]
  %v85 = vld [vmem:[%s1 + $0xbc] sm:$0xf]
  %v86 = vld [vmem:[%s1 + $0xc0] sm:$0xf]
  %v87 = vld [vmem:[%s1 + $0xc4] sm:$0xf]
  %v88 = vld [vmem:[%s1 + $0xc8] sm:$0xf]
  %v89 = vld [vmem:[%s1 + $0xcc] sm:$0xf]
  %v90 = vld [vmem:[%s1 + $0xd0] sm:$0xf]
  %v91 = vld [vmem:[%s1 + $0xd4] sm:$0xf]
  %v92 = vld [vmem:[%s1 + $0xd8] sm:$0xf]
  %v93 = vld [vmem:[%s1 + $0xdc] sm:$0xf]
  %v94 = vld [vmem:[%s1 + $0xe0] sm:$0xf]
  %v95 = vld [vmem:[%s1 + $0xe4] sm:$0xf]
  %v96 = vld [vmem:[%s1 + $0xe8] sm:$0xf]
  %v97 = vld [vmem:[%s1 + $0xec] sm:$0xf]
  %v98 = vld [vmem:[%s1 + $0xf0] sm:$0xf]
  %v99 = vld [vmem:[%s1 + $0xf4] sm:$0xf]
  %v100 = vld [vmem:[%s1 + $0xf8] sm:$0xf]
  %v101 = vld [vmem:[%s1 + $0xfc] sm:$0xf]
  %v102 = vld [vmem:[%s2] sm:$0x1]
  %v104 = vperm.slane %v102, 0
  %v170 = vunpack.c.l.b16 %v38
  %v171 = vunpack.c.l.b16 %v39
  %v172 = vunpack.c.l.b16 %v40
  %v173 = vunpack.c.l.b16 %v41
  %v174 = vunpack.c.l.b16 %v42
  %v175 = vunpack.c.l.b16 %v43
  %v176 = vunpack.c.l.b16 %v44
  %v177 = vunpack.c.l.b16 %v45
  %v178 = vunpack.c.l.b16 %v46
  %v179 = vunpack.c.l.b16 %v47
  %v180 = vunpack.c.l.b16 %v48
  %v181 = vunpack.c.l.b16 %v49
  %v182 = vunpack.c.l.b16 %v50
  %v183 = vunpack.c.l.b16 %v51
  %v184 = vunpack.c.l.b16 %v52
  %v185 = vunpack.c.l.b16 %v53
  %v186 = vunpack.c.l.b16 %v54
  %v187 = vunpack.c.l.b16 %v55
  %v188 = vunpack.c.l.b16 %v56
  %v189 = vunpack.c.l.b16 %v57
  %v190 = vunpack.c.l.b16 %v58
  %v191 = vunpack.c.l.b16 %v59
  %v192 = vunpack.c.l.b16 %v60
  %v193 = vunpack.c.l.b16 %v61
  %v194 = vunpack.c.l.b16 %v62
  %v195 = vunpack.c.l.b16 %v63
  %v196 = vunpack.c.l.b16 %v64
  %v197 = vunpack.c.l.b16 %v65
  %v198 = vunpack.c.l.b16 %v66
  %v199 = vunpack.c.l.b16 %v67
  %v200 = vunpack.c.l.b16 %v68
  %v201 = vunpack.c.l.b16 %v69
  %v202 = vunpack.c.l.b16 %v70
  %v203 = vunpack.c.l.b16 %v71
  %v204 = vunpack.c.l.b16 %v72
  %v205 = vunpack.c.l.b16 %v73
  %v206 = vunpack.c.l.b16 %v74
  %v207 = vunpack.c.l.b16 %v75
  %v208 = vunpack.c.l.b16 %v76
  %v209 = vunpack.c.l.b16 %v77
  %v210 = vunpack.c.l.b16 %v78
  %v211 = vunpack.c.l.b16 %v79
  %v212 = vunpack.c.l.b16 %v80
  %v213 = vunpack.c.l.b16 %v81
  %v214 = vunpack.c.l.b16 %v82
  %v215 = vunpack.c.l.b16 %v83
  %v216 = vunpack.c.l.b16 %v84
  %v217 = vunpack.c.l.b16 %v85
  %v218 = vunpack.c.l.b16 %v86
  %v219 = vunpack.c.l.b16 %v87
  %v220 = vunpack.c.l.b16 %v88
  %v221 = vunpack.c.l.b16 %v89
  %v222 = vunpack.c.l.b16 %v90
  %v223 = vunpack.c.l.b16 %v91
  %v224 = vunpack.c.l.b16 %v92
  %v225 = vunpack.c.l.b16 %v93
  %v226 = vunpack.c.l.b16 %v94
  %v227 = vunpack.c.l.b16 %v95
  %v228 = vunpack.c.l.b16 %v96
  %v229 = vunpack.c.l.b16 %v97
  %v230 = vunpack.c.l.b16 %v98
  %v231 = vunpack.c.l.b16 %v99
  %v232 = vunpack.c.l.b16 %v100
  %v233 = vunpack.c.l.b16 %v101
  %v234 = vpack.c.b16 %v171, %v170
  %v235 = vpack.c.b16 %v173, %v172
  %v236 = vpack.c.b16 %v175, %v174
  %v237 = vpack.c.b16 %v177, %v176
  %v238 = vpack.c.b16 %v179, %v178
  %v239 = vpack.c.b16 %v181, %v180
  %v240 = vpack.c.b16 %v183, %v182
  %v241 = vpack.c.b16 %v185, %v184
  %v242 = vpack.c.b16 %v187, %v186
  %v243 = vpack.c.b16 %v189, %v188
  %v244 = vpack.c.b16 %v191, %v190
  %v245 = vpack.c.b16 %v193, %v192
  %v246 = vpack.c.b16 %v195, %v194
  %v247 = vpack.c.b16 %v197, %v196
  %v248 = vpack.c.b16 %v199, %v198
  %v249 = vpack.c.b16 %v201, %v200
  %v250 = vpack.c.b16 %v203, %v202
  %v251 = vpack.c.b16 %v205, %v204
  %v252 = vpack.c.b16 %v207, %v206
  %v253 = vpack.c.b16 %v209, %v208
  %v254 = vpack.c.b16 %v211, %v210
  %v255 = vpack.c.b16 %v213, %v212
  %v256 = vpack.c.b16 %v215, %v214
  %v257 = vpack.c.b16 %v217, %v216
  %v258 = vpack.c.b16 %v219, %v218
  %v259 = vpack.c.b16 %v221, %v220
  %v260 = vpack.c.b16 %v223, %v222
  %v261 = vpack.c.b16 %v225, %v224
  %v262 = vpack.c.b16 %v227, %v226
  %v263 = vpack.c.b16 %v229, %v228
  %v264 = vpack.c.b16 %v231, %v230
  %v265 = vpack.c.b16 %v233, %v232
  %298 = vmatpush.bf16.msra.mxu0 %v241
  %299 = vmatpush.bf16.msra.mxu0 %v240
  %300 = vmatpush.bf16.msra.mxu0 %v239
  %301 = vmatpush.bf16.msra.mxu0 %v238
  %302 = vmatpush.bf16.msra.mxu0 %v237
  %303 = vmatpush.bf16.msra.mxu0 %v236
  %304 = vmatpush.bf16.msra.mxu0 %v235
  %305 = vmatpush.bf16.msra.mxu0 %v234
  %306 = vmatmul.bf16.gmra.mxu0 %v30
  %v307 = vpop.f32.mrf.mxu0
  %v308 = vadd.f32 %v104, %v307
  %v309 = vpop.f32.mrf.mxu0
  %v310 = vadd.f32 %v104, %v309
  %311 = vmatmul.bf16.gmra.mxu0 %v34
  %v312 = vpop.f32.mrf.mxu0
  %v313 = vadd.f32 %v104, %v312
  %v314 = vpop.f32.mrf.mxu0
  %v315 = vadd.f32 %v104, %v314
  %316 = vdwg.mxu0
  %317 = vmatpush.bf16.msra.mxu0 %v249
  %318 = vmatpush.bf16.msra.mxu0 %v248
  %319 = vmatpush.bf16.msra.mxu0 %v247
  %320 = vmatpush.bf16.msra.mxu0 %v246
  %321 = vmatpush.bf16.msra.mxu0 %v245
  %322 = vmatpush.bf16.msra.mxu0 %v244
  %323 = vmatpush.bf16.msra.mxu0 %v243
  %324 = vmatpush.bf16.msra.mxu0 %v242
  %325 = vmatmul.bf16.gmra.mxu0 %v31
  %v326 = vpop.f32.mrf.mxu0
  %v327 = vadd.f32 %v308, %v326
  %v328 = vpop.f32.mrf.mxu0
  %v329 = vadd.f32 %v310, %v328
  %330 = vmatmul.bf16.gmra.mxu0 %v35
  %v331 = vpop.f32.mrf.mxu0
  %v332 = vadd.f32 %v313, %v331
  %v333 = vpop.f32.mrf.mxu0
  %v334 = vadd.f32 %v315, %v333
  %335 = vdwg.mxu0
  %336 = vmatpush.bf16.msra.mxu0 %v257
  %337 = vmatpush.bf16.msra.mxu0 %v256
  %338 = vmatpush.bf16.msra.mxu0 %v255
  %339 = vmatpush.bf16.msra.mxu0 %v254
  %340 = vmatpush.bf16.msra.mxu0 %v253
  %341 = vmatpush.bf16.msra.mxu0 %v252
  %342 = vmatpush.bf16.msra.mxu0 %v251
  %343 = vmatpush.bf16.msra.mxu0 %v250
  %344 = vmatmul.bf16.gmra.mxu0 %v32
  %v345 = vpop.f32.mrf.mxu0
  %v346 = vadd.f32 %v327, %v345
  %v347 = vpop.f32.mrf.mxu0
  %v348 = vadd.f32 %v329, %v347
  %349 = vmatmul.bf16.gmra.mxu0 %v36
  %v350 = vpop.f32.mrf.mxu0
  %v351 = vadd.f32 %v332, %v350
  %v352 = vpop.f32.mrf.mxu0
  %v353 = vadd.f32 %v334, %v352
  %354 = vdwg.mxu0
  %355 = vmatpush.bf16.msra.mxu0 %v265
  %356 = vmatpush.bf16.msra.mxu0 %v264
  %357 = vmatpush.bf16.msra.mxu0 %v263
  %358 = vmatpush.bf16.msra.mxu0 %v262
  %359 = vmatpush.bf16.msra.mxu0 %v261
  %360 = vmatpush.bf16.msra.mxu0 %v260
  %361 = vmatpush.bf16.msra.mxu0 %v259
  %362 = vmatpush.bf16.msra.mxu0 %v258
  %363 = vmatmul.bf16.gmra.mxu0 %v33
  %v364 = vpop.f32.mrf.mxu0
  %v365 = vadd.f32 %v346, %v364
  %v366 = vpop.f32.mrf.mxu0
  %v367 = vadd.f32 %v348, %v366
  %368 = vmatmul.bf16.gmra.mxu0 %v37
  %v369 = vpop.f32.mrf.mxu0
  %v370 = vadd.f32 %v351, %v369
  %v371 = vpop.f32.mrf.mxu0
  %v372 = vadd.f32 %v353, %v371
  %373 = vdwg.mxu0
  %v374 = vmax.f32 %v365, 0.0
  %v375 = vmax.f32 %v367, 0.0
  %v376 = vmax.f32 %v370, 0.0
  %v377 = vmax.f32 %v372, 0.0
  %vm378 = vcmask 523264
  %379 = vst.msk [vmem:[%s3] sm:$0xff] %vm378, %v374
  %380 = vst.msk [vmem:[%s3 + $0x8] sm:$0xff] %vm378, %v375
  %381 = vst.msk [vmem:[%s3 + $0x10] sm:$0xff] %vm378, %v376
  %382 = vst.msk [vmem:[%s3 + $0x18] sm:$0xff] %vm378, %v377
  // Predicated region
  $region14: #{forward.5} parent=0 // pred_check
    _
  $region15: #{forward.5} parent=0 // pred_check_branch
    %384 = sbr.rel (0) target = $region17
  $region16: #{forward.5} parent=0 // pred_region
    _
  $region17: #{forward.5} parent=0 // pred_fallthru
    _
  // Predicated region
  $region18: #{forward.5} parent=0 // pred_check
    _
  $region19: #{forward.5} parent=0 // pred_check_branch
    %386 = sbr.rel (0) target = $region21
  $region20: #{forward.5} parent=0 // pred_region
    _
  $region21: #{forward.5} parent=0 // pred_fallthru
    _

// kernel: forward.6
$region0: #{forward.6}
  #allocation0 [shape = 'u32[]', space=smem, size = 0x4, offset = 0x4, fixed_abs, tag = 'smem constant byte address 0x4 - core index']
  #allocation1 [shape = 'u32[72,128]{1,0:T(1,128)}', space=vmem, size = 0x9000, scoped, tag = 'internal scratch']
  %s0 = inlined_call_operand.vmem [shape: f32[8,576], index: 0, kind: input, shape index: {}]
  %s1 = inlined_call_operand.vmem [shape: bf16[576,64], index: 1, kind: input, shape index: {}]
  %s2 = inlined_call_operand.vmem [shape: f32[1,64], index: 2, kind: input, shape index: {}]
  %s3 = inlined_call_operand.vmem [shape: f32[8,64], index: 3, kind: output, shape index: {}]
  %s4 = sld [smem:[#allocation0]]
  $region22: #{forward.6} parent=0
    _
  %s6 = ssub.s32 1, %s4
  %s7 = scalar_select 0, %s6, %s4
  // Predicated region
  $region2: #{forward.6} parent=0 // pred_check
    _
  $region3: #{forward.6} parent=0 // pred_check_branch
    %9 = sbr.rel (0) target = $region5
  $region4: #{forward.6} parent=0 // pred_region
    _
  $region5: #{forward.6} parent=0 // pred_fallthru
    _
  // Predicated region
  $region6: #{forward.6} parent=0 // pred_check
    _
  $region7: #{forward.6} parent=0 // pred_check_branch
    %11 = sbr.rel (0) target = $region9
  $region8: #{forward.6} parent=0 // pred_region
    _
  $region9: #{forward.6} parent=0 // pred_fallthru
    _
  // Predicated region
  $region10: #{forward.6} parent=0 // pred_check
    _
  $region11: #{forward.6} parent=0 // pred_check_branch
    %13 = sbr.rel (0) target = $region13
  $region12: #{forward.6} parent=0 // pred_region
    _
  $region13: #{forward.6} parent=0 // pred_fallthru
    _
  %v15 = vld [vmem:[%s0] sm:$0xff]
  %v16 = vld [vmem:[%s0 + $0x8] sm:$0xff]
  %v17 = vld [vmem:[%s0 + $0x10] sm:$0xff]
  %v18 = vld [vmem:[%s0 + $0x18] sm:$0xff]
  %v19 = vld [vmem:[%s0 + $0x20] sm:$0xff]
  %v20 = vpack.c.bf16 %v15, %v15
  %v21 = vpack.c.bf16 %v16, %v16
  %v22 = vpack.c.bf16 %v17, %v17
  %v23 = vpack.c.bf16 %v18, %v18
  %v24 = vpack.c.bf16 %v19, %v19
  %v25 = vld [vmem:[%s1] sm:$0xf]
  %v26 = vld [vmem:[%s1 + $0x4] sm:$0xf]
  %v27 = vld [vmem:[%s1 + $0x8] sm:$0xf]
  %v28 = vld [vmem:[%s1 + $0xc] sm:$0xf]
  %v29 = vld [vmem:[%s1 + $0x10] sm:$0xf]
  %v30 = vld [vmem:[%s1 + $0x14] sm:$0xf]
  %v31 = vld [vmem:[%s1 + $0x18] sm:$0xf]
  %v32 = vld [vmem:[%s1 + $0x1c] sm:$0xf]
  %v33 = vld [vmem:[%s1 + $0x20] sm:$0xf]
  %v34 = vld [vmem:[%s1 + $0x24] sm:$0xf]
  %v35 = vld [vmem:[%s1 + $0x28] sm:$0xf]
  %v36 = vld [vmem:[%s1 + $0x2c] sm:$0xf]
  %v37 = vld [vmem:[%s1 + $0x30] sm:$0xf]
  %v38 = vld [vmem:[%s1 + $0x34] sm:$0xf]
  %v39 = vld [vmem:[%s1 + $0x38] sm:$0xf]
  %v40 = vld [vmem:[%s1 + $0x3c] sm:$0xf]
  %v41 = vld [vmem:[%s1 + $0x40] sm:$0xf]
  %v42 = vld [vmem:[%s1 + $0x44] sm:$0xf]
  %v43 = vld [vmem:[%s1 + $0x48] sm:$0xf]
  %v44 = vld [vmem:[%s1 + $0x4c] sm:$0xf]
  %v45 = vld [vmem:[%s1 + $0x50] sm:$0xf]
  %v46 = vld [vmem:[%s1 + $0x54] sm:$0xf]
  %v47 = vld [vmem:[%s1 + $0x58] sm:$0xf]
  %v48 = vld [vmem:[%s1 + $0x5c] sm:$0xf]
  %v49 = vld [vmem:[%s1 + $0x60] sm:$0xf]
  %v50 = vld [vmem:[%s1 + $0x64] sm:$0xf]
  %v51 = vld [vmem:[%s1 + $0x68] sm:$0xf]
  %v52 = vld [vmem:[%s1 + $0x6c] sm:$0xf]
  %v53 = vld [vmem:[%s1 + $0x70] sm:$0xf]
  %v54 = vld [vmem:[%s1 + $0x74] sm:$0xf]
  %v55 = vld [vmem:[%s1 + $0x78] sm:$0xf]
  %v56 = vld [vmem:[%s1 + $0x7c] sm:$0xf]
  %v57 = vld [vmem:[%s1 + $0x80] sm:$0xf]
  %v58 = vld [vmem:[%s1 + $0x84] sm:$0xf]
  %v59 = vld [vmem:[%s1 + $0x88] sm:$0xf]
  %v60 = vld [vmem:[%s1 + $0x8c] sm:$0xf]
  %v61 = vld [vmem:[%s1 + $0x90] sm:$0xf]
  %v62 = vld [vmem:[%s1 + $0x94] sm:$0xf]
  %v63 = vld [vmem:[%s1 + $0x98] sm:$0xf]
  %v64 = vld [vmem:[%s1 + $0x9c] sm:$0xf]
  %v65 = vld [vmem:[%s1 + $0xa0] sm:$0xf]
  %v66 = vld [vmem:[%s1 + $0xa4] sm:$0xf]
  %v67 = vld [vmem:[%s1 + $0xa8] sm:$0xf]
  %v68 = vld [vmem:[%s1 + $0xac] sm:$0xf]
  %v69 = vld [vmem:[%s1 + $0xb0] sm:$0xf]
  %v70 = vld [vmem:[%s1 + $0xb4] sm:$0xf]
  %v71 = vld [vmem:[%s1 + $0xb8] sm:$0xf]
  %v72 = vld [vmem:[%s1 + $0xbc] sm:$0xf]
  %v73 = vld [vmem:[%s1 + $0xc0] sm:$0xf]
  %v74 = vld [vmem:[%s1 + $0xc4] sm:$0xf]
  %v75 = vld [vmem:[%s1 + $0xc8] sm:$0xf]
  %v76 = vld [vmem:[%s1 + $0xcc] sm:$0xf]
  %v77 = vld [vmem:[%s1 + $0xd0] sm:$0xf]
  %v78 = vld [vmem:[%s1 + $0xd4] sm:$0xf]
  %v79 = vld [vmem:[%s1 + $0xd8] sm:$0xf]
  %v80 = vld [vmem:[%s1 + $0xdc] sm:$0xf]
  %v81 = vld [vmem:[%s1 + $0xe0] sm:$0xf]
  %v82 = vld [vmem:[%s1 + $0xe4] sm:$0xf]
  %v83 = vld [vmem:[%s1 + $0xe8] sm:$0xf]
  %v84 = vld [vmem:[%s1 + $0xec] sm:$0xf]
  %v85 = vld [vmem:[%s1 + $0xf0] sm:$0xf]
  %v86 = vld [vmem:[%s1 + $0xf4] sm:$0xf]
  %v87 = vld [vmem:[%s1 + $0xf8] sm:$0xf]
  %v88 = vld [vmem:[%s1 + $0xfc] sm:$0xf]
  %v89 = vld [vmem:[%s1 + $0x100] sm:$0xf]
  %v90 = vld [vmem:[%s1 + $0x104] sm:$0xf]
  %v91 = vld [vmem:[%s1 + $0x108] sm:$0xf]
  %v92 = vld [vmem:[%s1 + $0x10c] sm:$0xf]
  %v93 = vld [vmem:[%s1 + $0x110] sm:$0xf]
  %v94 = vld [vmem:[%s1 + $0x114] sm:$0xf]
  %v95 = vld [vmem:[%s1 + $0x118] sm:$0xf]
  %v96 = vld [vmem:[%s1 + $0x11c] sm:$0xf]
  %v97 = vld [vmem:[%s2] sm:$0x1]
  %v99 = vperm.slane %v97, 0
  %v173 = vunpack.c.l.b16 %v25
  %v174 = vunpack.c.l.b16 %v26
  %v175 = vunpack.c.l.b16 %v27
  %v176 = vunpack.c.l.b16 %v28
  %v177 = vunpack.c.l.b16 %v29
  %v178 = vunpack.c.l.b16 %v30
  %v179 = vunpack.c.l.b16 %v31
  %v180 = vunpack.c.l.b16 %v32
  %v181 = vunpack.c.l.b16 %v33
  %v182 = vunpack.c.l.b16 %v34
  %v183 = vunpack.c.l.b16 %v35
  %v184 = vunpack.c.l.b16 %v36
  %v185 = vunpack.c.l.b16 %v37
  %v186 = vunpack.c.l.b16 %v38
  %v187 = vunpack.c.l.b16 %v39
  %v188 = vunpack.c.l.b16 %v40
  %v189 = vunpack.c.l.b16 %v41
  %v190 = vunpack.c.l.b16 %v42
  %v191 = vunpack.c.l.b16 %v43
  %v192 = vunpack.c.l.b16 %v44
  %v193 = vunpack.c.l.b16 %v45
  %v194 = vunpack.c.l.b16 %v46
  %v195 = vunpack.c.l.b16 %v47
  %v196 = vunpack.c.l.b16 %v48
  %v197 = vunpack.c.l.b16 %v49
  %v198 = vunpack.c.l.b16 %v50
  %v199 = vunpack.c.l.b16 %v51
  %v200 = vunpack.c.l.b16 %v52
  %v201 = vunpack.c.l.b16 %v53
  %v202 = vunpack.c.l.b16 %v54
  %v203 = vunpack.c.l.b16 %v55
  %v204 = vunpack.c.l.b16 %v56
  %v205 = vunpack.c.l.b16 %v57
  %v206 = vunpack.c.l.b16 %v58
  %v207 = vunpack.c.l.b16 %v59
  %v208 = vunpack.c.l.b16 %v60
  %v209 = vunpack.c.l.b16 %v61
  %v210 = vunpack.c.l.b16 %v62
  %v211 = vunpack.c.l.b16 %v63
  %v212 = vunpack.c.l.b16 %v64
  %v213 = vunpack.c.l.b16 %v65
  %v214 = vunpack.c.l.b16 %v66
  %v215 = vunpack.c.l.b16 %v67
  %v216 = vunpack.c.l.b16 %v68
  %v217 = vunpack.c.l.b16 %v69
  %v218 = vunpack.c.l.b16 %v70
  %v219 = vunpack.c.l.b16 %v71
  %v220 = vunpack.c.l.b16 %v72
  %v221 = vunpack.c.l.b16 %v73
  %v222 = vunpack.c.l.b16 %v74
  %v223 = vunpack.c.l.b16 %v75
  %v224 = vunpack.c.l.b16 %v76
  %v225 = vunpack.c.l.b16 %v77
  %v226 = vunpack.c.l.b16 %v78
  %v227 = vunpack.c.l.b16 %v79
  %v228 = vunpack.c.l.b16 %v80
  %v229 = vunpack.c.l.b16 %v81
  %v230 = vunpack.c.l.b16 %v82
  %v231 = vunpack.c.l.b16 %v83
  %v232 = vunpack.c.l.b16 %v84
  %v233 = vunpack.c.l.b16 %v85
  %v234 = vunpack.c.l.b16 %v86
  %v235 = vunpack.c.l.b16 %v87
  %v236 = vunpack.c.l.b16 %v88
  %v237 = vunpack.c.l.b16 %v89
  %v238 = vunpack.c.l.b16 %v90
  %v239 = vunpack.c.l.b16 %v91
  %v240 = vunpack.c.l.b16 %v92
  %v241 = vunpack.c.l.b16 %v93
  %v242 = vunpack.c.l.b16 %v94
  %v243 = vunpack.c.l.b16 %v95
  %v244 = vunpack.c.l.b16 %v96
  %v245 = vpack.c.b16 %v174, %v173
  %v246 = vpack.c.b16 %v176, %v175
  %v247 = vpack.c.b16 %v178, %v177
  %v248 = vpack.c.b16 %v180, %v179
  %v249 = vpack.c.b16 %v182, %v181
  %v250 = vpack.c.b16 %v184, %v183
  %v251 = vpack.c.b16 %v186, %v185
  %v252 = vpack.c.b16 %v188, %v187
  %v253 = vpack.c.b16 %v190, %v189
  %v254 = vpack.c.b16 %v192, %v191
  %v255 = vpack.c.b16 %v194, %v193
  %v256 = vpack.c.b16 %v196, %v195
  %v257 = vpack.c.b16 %v198, %v197
  %v258 = vpack.c.b16 %v200, %v199
  %v259 = vpack.c.b16 %v202, %v201
  %v260 = vpack.c.b16 %v204, %v203
  %v261 = vpack.c.b16 %v206, %v205
  %v262 = vpack.c.b16 %v208, %v207
  %v263 = vpack.c.b16 %v210, %v209
  %v264 = vpack.c.b16 %v212, %v211
  %v265 = vpack.c.b16 %v214, %v213
  %v266 = vpack.c.b16 %v216, %v215
  %v267 = vpack.c.b16 %v218, %v217
  %v268 = vpack.c.b16 %v220, %v219
  %v269 = vpack.c.b16 %v222, %v221
  %v270 = vpack.c.b16 %v224, %v223
  %v271 = vpack.c.b16 %v226, %v225
  %v272 = vpack.c.b16 %v228, %v227
  %v273 = vpack.c.b16 %v230, %v229
  %v274 = vpack.c.b16 %v232, %v231
  %v275 = vpack.c.b16 %v234, %v233
  %v276 = vpack.c.b16 %v236, %v235
  %v277 = vpack.c.b16 %v238, %v237
  %v278 = vpack.c.b16 %v240, %v239
  %v279 = vpack.c.b16 %v242, %v241
  %v280 = vpack.c.b16 %v244, %v243
  %vm317 = vcmask 523264
  %v319 = vsel %vm317, %v24, 0
  %321 = vmatpush.bf16.msra.mxu0 %v252
  %322 = vmatpush.bf16.msra.mxu0 %v251
  %323 = vmatpush.bf16.msra.mxu0 %v250
  %324 = vmatpush.bf16.msra.mxu0 %v249
  %325 = vmatpush.bf16.msra.mxu0 %v248
  %326 = vmatpush.bf16.msra.mxu0 %v247
  %327 = vmatpush.bf16.msra.mxu0 %v246
  %328 = vmatpush.bf16.msra.mxu0 %v245
  %329 = vmatmul.bf16.gmra.mxu0 %v20
  %v330 = vpop.f32.mrf.mxu0
  %v331 = vadd.f32 %v99, %v330
  %v332 = vpop.f32.mrf.mxu0
  %333 = vdwg.mxu0
  %334 = vmatpush.bf16.msra.mxu0 %v260
  %335 = vmatpush.bf16.msra.mxu0 %v259
  %336 = vmatpush.bf16.msra.mxu0 %v258
  %337 = vmatpush.bf16.msra.mxu0 %v257
  %338 = vmatpush.bf16.msra.mxu0 %v256
  %339 = vmatpush.bf16.msra.mxu0 %v255
  %340 = vmatpush.bf16.msra.mxu0 %v254
  %341 = vmatpush.bf16.msra.mxu0 %v253
  %342 = vmatmul.bf16.gmra.mxu0 %v21
  %v343 = vpop.f32.mrf.mxu0
  %v344 = vadd.f32 %v331, %v343
  %v345 = vpop.f32.mrf.mxu0
  %346 = vdwg.mxu0
  %347 = vmatpush.bf16.msra.mxu0 %v268
  %348 = vmatpush.bf16.msra.mxu0 %v267
  %349 = vmatpush.bf16.msra.mxu0 %v266
  %350 = vmatpush.bf16.msra.mxu0 %v265
  %351 = vmatpush.bf16.msra.mxu0 %v264
  %352 = vmatpush.bf16.msra.mxu0 %v263
  %353 = vmatpush.bf16.msra.mxu0 %v262
  %354 = vmatpush.bf16.msra.mxu0 %v261
  %355 = vmatmul.bf16.gmra.mxu0 %v22
  %v356 = vpop.f32.mrf.mxu0
  %v357 = vadd.f32 %v344, %v356
  %v358 = vpop.f32.mrf.mxu0
  %359 = vdwg.mxu0
  %360 = vmatpush.bf16.msra.mxu0 %v276
  %361 = vmatpush.bf16.msra.mxu0 %v275
  %362 = vmatpush.bf16.msra.mxu0 %v274
  %363 = vmatpush.bf16.msra.mxu0 %v273
  %364 = vmatpush.bf16.msra.mxu0 %v272
  %365 = vmatpush.bf16.msra.mxu0 %v271
  %366 = vmatpush.bf16.msra.mxu0 %v270
  %367 = vmatpush.bf16.msra.mxu0 %v269
  %368 = vmatmul.bf16.gmra.mxu0 %v23
  %v369 = vpop.f32.mrf.mxu0
  %v370 = vadd.f32 %v357, %v369
  %v371 = vpop.f32.mrf.mxu0
  %372 = vdwg.mxu0
  %373 = vmatpush.bf16.msra.mxu0 0
  %374 = vmatpush.bf16.msra.mxu0 0
  %375 = vmatpush.bf16.msra.mxu0 0
  %376 = vmatpush.bf16.msra.mxu0 0
  %377 = vmatpush.bf16.msra.mxu0 %v280
  %378 = vmatpush.bf16.msra.mxu0 %v279
  %379 = vmatpush.bf16.msra.mxu0 %v278
  %380 = vmatpush.bf16.msra.mxu0 %v277
  %381 = vmatmul.bf16.gmra.mxu0 %v319
  %v382 = vpop.f32.mrf.mxu0
  %v383 = vadd.f32 %v370, %v382
  %v384 = vpop.f32.mrf.mxu0
  %385 = vdwg.mxu0
  %v386 = vmax.f32 %v383, 0.0
  %387 = vst.msk [vmem:[%s3] sm:$0xff] %vm317, %v386
  // Predicated region
  $region14: #{forward.6} parent=0 // pred_check
    _
  $region15: #{forward.6} parent=0 // pred_check_branch
    %389 = sbr.rel (0) target = $region17
  $region16: #{forward.6} parent=0 // pred_region
    _
  $region17: #{forward.6} parent=0 // pred_fallthru
    _
  // Predicated region
  $region18: #{forward.6} parent=0 // pred_check
    _
  $region19: #{forward.6} parent=0 // pred_check_branch
    %391 = sbr.rel (0) target = $region21
  $region20: #{forward.6} parent=0 // pred_region
    _
  $region21: #{forward.6} parent=0 // pred_fallthru
    _

// kernel: forward.7
$region0: #{forward.7}
  #allocation0 [shape = 'u32[]', space=smem, size = 0x4, offset = 0x4, fixed_abs, tag = 'smem constant byte address 0x4 - core index']
  #allocation1 [shape = 'u32[72,128]{1,0:T(1,128)}', space=vmem, size = 0x9000, scoped, tag = 'internal scratch']
  %s0 = inlined_call_operand.vmem [shape: f32[2,256], index: 0, kind: input, shape index: {}]
  %s1 = inlined_call_operand.vmem [shape: f32[16,2], index: 1, kind: input, shape index: {}]
  %s2 = inlined_call_operand.vmem [shape: f32[144,2], index: 2, kind: input, shape index: {}]
  %s3 = inlined_call_operand.vmem [shape: f32[16,144], index: 3, kind: input, shape index: {}]
  %s4 = inlined_call_operand.vmem [shape: f32[144,1], index: 4, kind: input, shape index: {}]
  %s5 = inlined_call_operand.vmem [shape: f32[16,1], index: 5, kind: input, shape index: {}]
  %s6 = inlined_call_operand.vmem [shape: bf16[256,32], index: 6, kind: input, shape index: {}]
  %s7 = inlined_call_operand.vmem [shape: f32[1,32], index: 7, kind: input, shape index: {}]
  %s8 = inlined_call_operand.vmem [shape: bf16[32,32], index: 8, kind: input, shape index: {}]
  %s9 = inlined_call_operand.vmem [shape: f32[1,32], index: 9, kind: input, shape index: {}]
  %s10 = inlined_call_operand.vmem [shape: bf16[32,32], index: 10, kind: input, shape index: {}]
  %s11 = inlined_call_operand.vmem [shape: f32[1,32], index: 11, kind: input, shape index: {}]
  %s12 = inlined_call_operand.vmem [shape: bf16[32,4], index: 12, kind: input, shape index: {}]
  %s13 = inlined_call_operand.vmem [shape: f32[1,4], index: 13, kind: input, shape index: {}]
  %s14 = inlined_call_operand.vmem [shape: bf16[32,4], index: 14, kind: input, shape index: {}]
  %s15 = inlined_call_operand.vmem [shape: f32[1,4], index: 15, kind: input, shape index: {}]
  %s16 = inlined_call_operand.vmem [shape: f32[1,32], index: 16, kind: input, shape index: {}]
  %s17 = inlined_call_operand.vmem [shape: bf16[32,32], index: 17, kind: input, shape index: {}]
  %s18 = inlined_call_operand.vmem [shape: f32[1,32], index: 18, kind: input, shape index: {}]
  %s19 = inlined_call_operand.vmem [shape: bf16[32,32], index: 19, kind: input, shape index: {}]
  %s20 = inlined_call_operand.vmem [shape: f32[1,32], index: 20, kind: input, shape index: {}]
  %s21 = inlined_call_operand.vmem [shape: bf16[32,4], index: 21, kind: input, shape index: {}]
  %s22 = inlined_call_operand.vmem [shape: f32[1,4], index: 22, kind: input, shape index: {}]
  %s23 = inlined_call_operand.vmem [shape: f32[16,4], index: 23, kind: output, shape index: {}]
  %s24 = sld [smem:[#allocation0]]
  $region102: #{forward.7} parent=0
    _
  %s26 = ssub.s32 1, %s24
  %s27 = scalar_select 0, %s26, %s24
  // Predicated region
  $region2: #{forward.7} parent=0 // pred_check
    _
  $region3: #{forward.7} parent=0 // pred_check_branch
    %29 = sbr.rel (0) target = $region5
  $region4: #{forward.7} parent=0 // pred_region
    _
  $region5: #{forward.7} parent=0 // pred_fallthru
    _
  // Predicated region
  $region6: #{forward.7} parent=0 // pred_check
    _
  $region7: #{forward.7} parent=0 // pred_check_branch
    %31 = sbr.rel (0) target = $region9
  $region8: #{forward.7} parent=0 // pred_region
    _
  $region9: #{forward.7} parent=0 // pred_fallthru
    _
  // Predicated region
  $region10: #{forward.7} parent=0 // pred_check
    _
  $region11: #{forward.7} parent=0 // pred_check_branch
    %33 = sbr.rel (0) target = $region13
  $region12: #{forward.7} parent=0 // pred_region
    _
  $region13: #{forward.7} parent=0 // pred_fallthru
    _
  // Predicated region
  $region14: #{forward.7} parent=0 // pred_check
    _
  $region15: #{forward.7} parent=0 // pred_check_branch
    %35 = sbr.rel (0) target = $region17
  $region16: #{forward.7} parent=0 // pred_region
    _
  $region17: #{forward.7} parent=0 // pred_fallthru
    _
  // Predicated region
  $region18: #{forward.7} parent=0 // pred_check
    _
  $region19: #{forward.7} parent=0 // pred_check_branch
    %37 = sbr.rel (0) target = $region21
  $region20: #{forward.7} parent=0 // pred_region
    _
  $region21: #{forward.7} parent=0 // pred_fallthru
    _
  // Predicated region
  $region22: #{forward.7} parent=0 // pred_check
    _
  $region23: #{forward.7} parent=0 // pred_check_branch
    %39 = sbr.rel (0) target = $region25
  $region24: #{forward.7} parent=0 // pred_region
    _
  $region25: #{forward.7} parent=0 // pred_fallthru
    _
  // Predicated region
  $region26: #{forward.7} parent=0 // pred_check
    _
  $region27: #{forward.7} parent=0 // pred_check_branch
    %41 = sbr.rel (0) target = $region29
  $region28: #{forward.7} parent=0 // pred_region
    _
  $region29: #{forward.7} parent=0 // pred_fallthru
    _
  // Predicated region
  $region30: #{forward.7} parent=0 // pred_check
    _
  $region31: #{forward.7} parent=0 // pred_check_branch
    %43 = sbr.rel (0) target = $region33
  $region32: #{forward.7} parent=0 // pred_region
    _
  $region33: #{forward.7} parent=0 // pred_fallthru
    _
  // Predicated region
  $region34: #{forward.7} parent=0 // pred_check
    _
  $region35: #{forward.7} parent=0 // pred_check_branch
    %45 = sbr.rel (0) target = $region37
  $region36: #{forward.7} parent=0 // pred_region
    _
  $region37: #{forward.7} parent=0 // pred_fallthru
    _
  // Predicated region
  $region38: #{forward.7} parent=0 // pred_check
    _
  $region39: #{forward.7} parent=0 // pred_check_branch
    %47 = sbr.rel (0) target = $region41
  $region40: #{forward.7} parent=0 // pred_region
    _
  $region41: #{forward.7} parent=0 // pred_fallthru
    _
  // Predicated region
  $region42: #{forward.7} parent=0 // pred_check
    _
  $region43: #{forward.7} parent=0 // pred_check_branch
    %49 = sbr.rel (0) target = $region45
  $region44: #{forward.7} parent=0 // pred_region
    _
  $region45: #{forward.7} parent=0 // pred_fallthru
    _
  // Predicated region
  $region46: #{forward.7} parent=0 // pred_check
    _
  $region47: #{forward.7} parent=0 // pred_check_branch
    %51 = sbr.rel (0) target = $region49
  $region48: #{forward.7} parent=0 // pred_region
    _
  $region49: #{forward.7} parent=0 // pred_fallthru
    _
  // Predicated region
  $region50: #{forward.7} parent=0 // pred_check
    _
  $region51: #{forward.7} parent=0 // pred_check_branch
    %53 = sbr.rel (0) target = $region53
  $region52: #{forward.7} parent=0 // pred_region
    _
  $region53: #{forward.7} parent=0 // pred_fallthru
    _
  // Predicated region
  $region54: #{forward.7} parent=0 // pred_check
    _
  $region55: #{forward.7} parent=0 // pred_check_branch
    %55 = sbr.rel (0) target = $region57
  $region56: #{forward.7} parent=0 // pred_region
    _
  $region57: #{forward.7} parent=0 // pred_fallthru
    _
  // Predicated region
  $region58: #{forward.7} parent=0 // pred_check
    _
  $region59: #{forward.7} parent=0 // pred_check_branch
    %57 = sbr.rel (0) target = $region61
  $region60: #{forward.7} parent=0 // pred_region
    _
  $region61: #{forward.7} parent=0 // pred_fallthru
    _
  // Predicated region
  $region62: #{forward.7} parent=0 // pred_check
    _
  $region63: #{forward.7} parent=0 // pred_check_branch
    %59 = sbr.rel (0) target = $region65
  $region64: #{forward.7} parent=0 // pred_region
    _
  $region65: #{forward.7} parent=0 // pred_fallthru
    _
  // Predicated region
  $region66: #{forward.7} parent=0 // pred_check
    _
  $region67: #{forward.7} parent=0 // pred_check_branch
    %61 = sbr.rel (0) target = $region69
  $region68: #{forward.7} parent=0 // pred_region
    _
  $region69: #{forward.7} parent=0 // pred_fallthru
    _
  // Predicated region
  $region70: #{forward.7} parent=0 // pred_check
    _
  $region71: #{forward.7} parent=0 // pred_check_branch
    %63 = sbr.rel (0) target = $region73
  $region72: #{forward.7} parent=0 // pred_region
    _
  $region73: #{forward.7} parent=0 // pred_fallthru
    _
  // Predicated region
  $region74: #{forward.7} parent=0 // pred_check
    _
  $region75: #{forward.7} parent=0 // pred_check_branch
    %65 = sbr.rel (0) target = $region77
  $region76: #{forward.7} parent=0 // pred_region
    _
  $region77: #{forward.7} parent=0 // pred_fallthru
    _
  // Predicated region
  $region78: #{forward.7} parent=0 // pred_check
    _
  $region79: #{forward.7} parent=0 // pred_check_branch
    %67 = sbr.rel (0) target = $region81
  $region80: #{forward.7} parent=0 // pred_region
    _
  $region81: #{forward.7} parent=0 // pred_fallthru
    _
  // Predicated region
  $region82: #{forward.7} parent=0 // pred_check
    _
  $region83: #{forward.7} parent=0 // pred_check_branch
    %69 = sbr.rel (0) target = $region85
  $region84: #{forward.7} parent=0 // pred_region
    _
  $region85: #{forward.7} parent=0 // pred_fallthru
    _
  // Predicated region
  $region86: #{forward.7} parent=0 // pred_check
    _
  $region87: #{forward.7} parent=0 // pred_check_branch
    %71 = sbr.rel (0) target = $region89
  $region88: #{forward.7} parent=0 // pred_region
    _
  $region89: #{forward.7} parent=0 // pred_fallthru
    _
  // Predicated region
  $region90: #{forward.7} parent=0 // pred_check
    _
  $region91: #{forward.7} parent=0 // pred_check_branch
    %73 = sbr.rel (0) target = $region93
  $region92: #{forward.7} parent=0 // pred_region
    _
  $region93: #{forward.7} parent=0 // pred_fallthru
    _
  %v75 = vld [vmem:[%s0] sm:$0xf]
  %v76 = vld [vmem:[%s1] sm:$0xff]
  %v77 = vld [vmem:[%s1 + $0x8] sm:$0xff]
  %v78 = vld [vmem:[%s2] sm:$0xff]
  %v79 = vld [vmem:[%s2 + $0x8] sm:$0xff]
  %v80 = vld [vmem:[%s2 + $0x10] sm:$0xff]
  %v81 = vld [vmem:[%s2 + $0x18] sm:$0xff]
  %v82 = vld [vmem:[%s2 + $0x20] sm:$0xff]
  %v83 = vld [vmem:[%s2 + $0x28] sm:$0xff]
  %v84 = vld [vmem:[%s2 + $0x30] sm:$0xff]
  %v85 = vld [vmem:[%s2 + $0x38] sm:$0xff]
  %v86 = vld [vmem:[%s2 + $0x40] sm:$0xff]
  %v87 = vld [vmem:[%s2 + $0x48] sm:$0xff]
  %v88 = vld [vmem:[%s2 + $0x50] sm:$0xff]
  %v89 = vld [vmem:[%s2 + $0x58] sm:$0xff]
  %v90 = vld [vmem:[%s2 + $0x60] sm:$0xff]
  %v91 = vld [vmem:[%s2 + $0x68] sm:$0xff]
  %v92 = vld [vmem:[%s2 + $0x70] sm:$0xff]
  %v93 = vld [vmem:[%s2 + $0x78] sm:$0xff]
  %v94 = vld [vmem:[%s2 + $0x80] sm:$0xff]
  %v95 = vld [vmem:[%s2 + $0x88] sm:$0xff]
  %v96 = vld [vmem:[%s3] sm:$0xff]
  %v97 = vld [vmem:[%s3 + $0x8] sm:$0xff]
  %v98 = vld [vmem:[%s3 + $0x10] sm:$0xff]
  %v99 = vld [vmem:[%s3 + $0x18] sm:$0xff]
  %v100 = vld [vmem:[%s4] sm:$0xff]
  %v101 = vld [vmem:[%s4 + $0x8] sm:$0xff]
  %v102 = vld [vmem:[%s4 + $0x10] sm:$0xff]
  %v103 = vld [vmem:[%s4 + $0x18] sm:$0xff]
  %v104 = vld [vmem:[%s4 + $0x20] sm:$0xff]
  %v105 = vld [vmem:[%s4 + $0x28] sm:$0xff]
  %v106 = vld [vmem:[%s4 + $0x30] sm:$0xff]
  %v107 = vld [vmem:[%s4 + $0x38] sm:$0xff]
  %v108 = vld [vmem:[%s4 + $0x40] sm:$0xff]
  %v109 = vld [vmem:[%s4 + $0x48] sm:$0xff]
  %v110 = vld [vmem:[%s4 + $0x50] sm:$0xff]
  %v111 = vld [vmem:[%s4 + $0x58] sm:$0xff]
  %v112 = vld [vmem:[%s4 + $0x60] sm:$0xff]
  %v113 = vld [vmem:[%s4 + $0x68] sm:$0xff]
  %v114 = vld [vmem:[%s4 + $0x70] sm:$0xff]
  %v115 = vld [vmem:[%s4 + $0x78] sm:$0xff]
  %v116 = vld [vmem:[%s4 + $0x80] sm:$0xff]
  %v117 = vld [vmem:[%s4 + $0x88] sm:$0xff]
  %v118 = vld [vmem:[%s5] sm:$0xff]
  %v119 = vld [vmem:[%s5 + $0x8] sm:$0xff]
  %v120 = vld [vmem:[%s6] sm:$0xf]
  %v121 = vld [vmem:[%s6 + $0x4] sm:$0xf]
  %v122 = vld [vmem:[%s6 + $0x8] sm:$0xf]
  %v123 = vld [vmem:[%s6 + $0xc] sm:$0xf]
  %v124 = vld [vmem:[%s6 + $0x10] sm:$0xf]
  %v125 = vld [vmem:[%s6 + $0x14] sm:$0xf]
  %v126 = vld [vmem:[%s6 + $0x18] sm:$0xf]
  %v127 = vld [vmem:[%s6 + $0x1c] sm:$0xf]
  %v128 = vld [vmem:[%s6 + $0x20] sm:$0xf]
  %v129 = vld [vmem:[%s6 + $0x24] sm:$0xf]
  %v130 = vld [vmem:[%s6 + $0x28] sm:$0xf]
  %v131 = vld [vmem:[%s6 + $0x2c] sm:$0xf]
  %v132 = vld [vmem:[%s6 + $0x30] sm:$0xf]
  %v133 = vld [vmem:[%s6 + $0x34] sm:$0xf]
  %v134 = vld [vmem:[%s6 + $0x38] sm:$0xf]
  %v135 = vld [vmem:[%s6 + $0x3c] sm:$0xf]
  %v136 = vld [vmem:[%s6 + $0x40] sm:$0xf]
  %v137 = vld [vmem:[%s6 + $0x44] sm:$0xf]
  %v138 = vld [vmem:[%s6 + $0x48] sm:$0xf]
  %v139 = vld [vmem:[%s6 + $0x4c] sm:$0xf]
  %v140 = vld [vmem:[%s6 + $0x50] sm:$0xf]
  %v141 = vld [vmem:[%s6 + $0x54] sm:$0xf]
  %v142 = vld [vmem:[%s6 + $0x58] sm:$0xf]
  %v143 = vld [vmem:[%s6 + $0x5c] sm:$0xf]
  %v144 = vld [vmem:[%s6 + $0x60] sm:$0xf]
  %v145 = vld [vmem:[%s6 + $0x64] sm:$0xf]
  %v146 = vld [vmem:[%s6 + $0x68] sm:$0xf]
  %v147 = vld [vmem:[%s6 + $0x6c] sm:$0xf]
  %v148 = vld [vmem:[%s6 + $0x70] sm:$0xf]
  %v149 = vld [vmem:[%s6 + $0x74] sm:$0xf]
  %v150 = vld [vmem:[%s6 + $0x78] sm:$0xf]
  %v151 = vld [vmem:[%s6 + $0x7c] sm:$0xf]
  %153 = vst [vmem:[#allocation1] ss:$4 sm:$0xff] %v75
  %v154 = vld.sshfl [vmem:[#allocation1] sm:$0xff pattern:$0x73625140]
  %v155 = vld.sshfl [vmem:[#allocation1 + $0x8] sm:$0xff pattern:$0x73625140]
  %v158 = vpack.c.bf16 %v154, %v154
  %v159 = vpack.c.bf16 %v155, %v155
  %v160 = vld [vmem:[%s7] sm:$0x1]
  %v162 = vperm.slane %v160, 0
  %v196 = vunpack.c.l.b16 %v120
  %v197 = vunpack.c.l.b16 %v121
  %v198 = vunpack.c.l.b16 %v122
  %v199 = vunpack.c.l.b16 %v123
  %v200 = vunpack.c.l.b16 %v124
  %v201 = vunpack.c.l.b16 %v125
  %v202 = vunpack.c.l.b16 %v126
  %v203 = vunpack.c.l.b16 %v127
  %v204 = vunpack.c.l.b16 %v128
  %v205 = vunpack.c.l.b16 %v129
  %v206 = vunpack.c.l.b16 %v130
  %v207 = vunpack.c.l.b16 %v131
  %v208 = vunpack.c.l.b16 %v132
  %v209 = vunpack.c.l.b16 %v133
  %v210 = vunpack.c.l.b16 %v134
  %v211 = vunpack.c.l.b16 %v135
  %v212 = vunpack.c.l.b16 %v136
  %v213 = vunpack.c.l.b16 %v137
  %v214 = vunpack.c.l.b16 %v138
  %v215 = vunpack.c.l.b16 %v139
  %v216 = vunpack.c.l.b16 %v140
  %v217 = vunpack.c.l.b16 %v141
  %v218 = vunpack.c.l.b16 %v142
  %v219 = vunpack.c.l.b16 %v143
  %v220 = vunpack.c.l.b16 %v144
  %v221 = vunpack.c.l.b16 %v145
  %v222 = vunpack.c.l.b16 %v146
  %v223 = vunpack.c.l.b16 %v147
  %v224 = vunpack.c.l.b16 %v148
  %v225 = vunpack.c.l.b16 %v149
  %v226 = vunpack.c.l.b16 %v150
  %v227 = vunpack.c.l.b16 %v151
  %v228 = vpack.c.b16 %v197, %v196
  %v229 = vpack.c.b16 %v199, %v198
  %v230 = vpack.c.b16 %v201, %v200
  %v231 = vpack.c.b16 %v203, %v202
  %v232 = vpack.c.b16 %v205, %v204
  %v233 = vpack.c.b16 %v207, %v206
  %v234 = vpack.c.b16 %v209, %v208
  %v235 = vpack.c.b16 %v211, %v210
  %v236 = vpack.c.b16 %v213, %v212
  %v237 = vpack.c.b16 %v215, %v214
  %v238 = vpack.c.b16 %v217, %v216
  %v239 = vpack.c.b16 %v219, %v218
  %v240 = vpack.c.b16 %v221, %v220
  %v241 = vpack.c.b16 %v223, %v222
  %v242 = vpack.c.b16 %v225, %v224
  %v243 = vpack.c.b16 %v227, %v226
  %260 = vmatpush.bf16.msra.mxu0 %v235
  %261 = vmatpush.bf16.msra.mxu0 %v234
  %262 = vmatpush.bf16.msra.mxu0 %v233
  %263 = vmatpush.bf16.msra.mxu0 %v232
  %264 = vmatpush.bf16.msra.mxu0 %v231
  %265 = vmatpush.bf16.msra.mxu0 %v230
  %266 = vmatpush.bf16.msra.mxu0 %v229
  %267 = vmatpush.bf16.msra.mxu0 %v228
  %268 = vmatmul.bf16.gmra.mxu0 %v158
  %v269 = vpop.f32.mrf.mxu0
  %v270 = vadd.f32 %v162, %v269
  %v271 = vpop.f32.mrf.mxu0
  %272 = vdwg.mxu0
  %273 = vmatpush.bf16.msra.mxu0 %v243
  %274 = vmatpush.bf16.msra.mxu0 %v242
  %275 = vmatpush.bf16.msra.mxu0 %v241
  %276 = vmatpush.bf16.msra.mxu0 %v240
  %277 = vmatpush.bf16.msra.mxu0 %v239
  %278 = vmatpush.bf16.msra.mxu0 %v238
  %279 = vmatpush.bf16.msra.mxu0 %v237
  %280 = vmatpush.bf16.msra.mxu0 %v236
  %281 = vmatmul.bf16.gmra.mxu0 %v159
  %v282 = vpop.f32.mrf.mxu0
  %v283 = vadd.f32 %v270, %v282
  %v284 = vpop.f32.mrf.mxu0
  %285 = vdwg.mxu0
  %v286 = vmax.f32 %v283, 0.0
  %v287 = vld [vmem:[%s8] sm:$0xf]
  %v288 = vld [vmem:[%s8 + $0x4] sm:$0xf]
  %v289 = vld [vmem:[%s8 + $0x8] sm:$0xf]
  %v290 = vld [vmem:[%s8 + $0xc] sm:$0xf]
  %v291 = vpack.c.bf16 %v286, %v286
  %v292 = vld [vmem:[%s9] sm:$0x1]
  %v294 = vperm.slane %v292, 0
  %v300 = vunpack.c.l.b16 %v287
  %v301 = vunpack.c.l.b16 %v288
  %v302 = vunpack.c.l.b16 %v289
  %v303 = vunpack.c.l.b16 %v290
  %v304 = vpack.c.b16 %v301, %v300
  %v305 = vpack.c.b16 %v303, %v302
  %vm308 = vcmask 261120
  %v310 = vsel %vm308, %v291, 0
  %312 = vmatpush.bf16.msra.mxu0 0
  %313 = vmatpush.bf16.msra.mxu0 0
  %314 = vmatpush.bf16.msra.mxu0 0
  %315 = vmatpush.bf16.msra.mxu0 0
  %316 = vmatpush.bf16.msra.mxu0 0
  %317 = vmatpush.bf16.msra.mxu0 0
  %318 = vmatpush.bf16.msra.mxu0 %v305
  %319 = vmatpush.bf16.msra.mxu0 %v304
  %320 = vmatmul.bf16.gmra.mxu0 %v310
  %v321 = vpop.f32.mrf.mxu0
  %v322 = vadd.f32 %v294, %v321
  %v323 = vpop.f32.mrf.mxu0
  %324 = vdwg.mxu0
  %v325 = vmax.f32 %v322, 0.0
  %v326 = vld [vmem:[%s10] sm:$0xf]
  %v327 = vld [vmem:[%s10 + $0x4] sm:$0xf]
  %v328 = vld [vmem:[%s10 + $0x8] sm:$0xf]
  %v329 = vld [vmem:[%s10 + $0xc] sm:$0xf]
  %v330 = vpack.c.bf16 %v325, %v325
  %v331 = vld [vmem:[%s11] sm:$0x1]
  %v333 = vperm.slane %v331, 0
  %v339 = vunpack.c.l.b16 %v326
  %v340 = vunpack.c.l.b16 %v327
  %v341 = vunpack.c.l.b16 %v328
  %v342 = vunpack.c.l.b16 %v329
  %v343 = vpack.c.b16 %v340, %v339
  %v344 = vpack.c.b16 %v342, %v341
  %v348 = vsel %vm308, %v330, 0
  %350 = vmatpush.bf16.msra.mxu0 0
  %351 = vmatpush.bf16.msra.mxu0 0
  %352 = vmatpush.bf16.msra.mxu0 0
  %353 = vmatpush.bf16.msra.mxu0 0
  %354 = vmatpush.bf16.msra.mxu0 0
  %355 = vmatpush.bf16.msra.mxu0 0
  %356 = vmatpush.bf16.msra.mxu0 %v344
  %357 = vmatpush.bf16.msra.mxu0 %v343
  %358 = vmatmul.bf16.gmra.mxu0 %v348
  %v359 = vpop.f32.mrf.mxu0
  %v360 = vadd.f32 %v333, %v359
  %v361 = vpop.f32.mrf.mxu0
  %362 = vdwg.mxu0
  %v363 = vmax.f32 %v360, 0.0
  %v364 = vld [vmem:[%s12] sm:$0xf]
  %v365 = vld [vmem:[%s12 + $0x4] sm:$0xf]
  %v366 = vld [vmem:[%s12 + $0x8] sm:$0xf]
  %v367 = vld [vmem:[%s12 + $0xc] sm:$0xf]
  %v368 = vpack.c.bf16 %v363, %v363
  %v369 = vld [vmem:[%s13] sm:$0x1]
  %v371 = vperm.slane %v369, 0
  %v377 = vunpack.c.l.b16 %v364
  %v378 = vunpack.c.l.b16 %v365
  %v379 = vunpack.c.l.b16 %v366
  %v380 = vunpack.c.l.b16 %v367
  %v381 = vpack.c.b16 %v378, %v377
  %v382 = vpack.c.b16 %v380, %v379
  %v386 = vsel %vm308, %v368, 0
  %388 = vmatpush.bf16.msra.mxu0 0
  %389 = vmatpush.bf16.msra.mxu0 0
  %390 = vmatpush.bf16.msra.mxu0 0
  %391 = vmatpush.bf16.msra.mxu0 0
  %392 = vmatpush.bf16.msra.mxu0 0
  %393 = vmatpush.bf16.msra.mxu0 0
  %394 = vmatpush.bf16.msra.mxu0 %v382
  %395 = vmatpush.bf16.msra.mxu0 %v381
  %396 = vmatmul.bf16.gmra.mxu0 %v386
  %v397 = vpop.f32.mrf.mxu0
  %v398 = vadd.f32 %v371, %v397
  %v399 = vpop.f32.mrf.mxu0
  %400 = vdwg.mxu0
  %vm401 = vcmask 15360
  %v403 = vsel %vm401, %v76, 0
  %v406 = vsel %vm401, %v77, 0
  %vm408 = vcmask 1041408
  %v410 = vsel %vm408, %v398, 0
  %412 = vmatpush.msra.mxu0 0.0
  %413 = vmatpush.msra.mxu0 0.0
  %414 = vmatpush.msra.mxu0 0.0
  %415 = vmatpush.msra.mxu0 0.0
  %416 = vmatpush.msra.mxu0 0.0
  %417 = vmatpush.msra.mxu0 0.0
  %418 = vmatpush.msra.mxu0 0.0
  %419 = vmatpush.msra.mxu0 0.0
  %420 = vmatpush.msra.mxu0 0.0
  %421 = vmatpush.msra.mxu0 0.0
  %422 = vmatpush.msra.mxu0 0.0
  %423 = vmatpush.msra.mxu0 0.0
  %424 = vmatpush.msra.mxu0 0.0
  %425 = vmatpush.msra.mxu0 0.0
  %426 = vmatpush.msra.mxu0 0.0
  %427 = vmatpush.msra.mxu0 %v410
  %428 = vmatmul.f32.gmra.mxu0 %v403
  %v429 = vpop.f32.mrf.mxu0
  %v430 = vadd.f32 0.0, %v429
  %431 = vmatmul.f32.gmra.mxu0 %v406
  %v432 = vpop.f32.mrf.mxu0
  %v433 = vadd.f32 0.0, %v432
  %434 = vdwg.mxu0
  %v435 = vld [vmem:[%s14] sm:$0xf]
  %v436 = vld [vmem:[%s14 + $0x4] sm:$0xf]
  %v437 = vld [vmem:[%s14 + $0x8] sm:$0xf]
  %v438 = vld [vmem:[%s14 + $0xc] sm:$0xf]
  %v439 = vld [vmem:[%s15] sm:$0x1]
  %v441 = vperm.slane %v439, 0
  %v447 = vunpack.c.l.b16 %v435
  %v448 = vunpack.c.l.b16 %v436
  %v449 = vunpack.c.l.b16 %v437
  %v450 = vunpack.c.l.b16 %v438
  %v451 = vpack.c.b16 %v448, %v447
  %v452 = vpack.c.b16 %v450, %v449
  %455 = vmatpush.bf16.msra.mxu0 0
  %456 = vmatpush.bf16.msra.mxu0 0
  %457 = vmatpush.bf16.msra.mxu0 0
  %458 = vmatpush.bf16.msra.mxu0 0
  %459 = vmatpush.bf16.msra.mxu0 0
  %460 = vmatpush.bf16.msra.mxu0 0
  %461 = vmatpush.bf16.msra.mxu0 %v452
  %462 = vmatpush.bf16.msra.mxu0 %v451
  %463 = vmatmul.bf16.gmra.mxu0 %v386
  %v464 = vpop.f32.mrf.mxu0
  %v465 = vadd.f32 %v441, %v464
  %v466 = vpop.f32.mrf.mxu0
  %467 = vdwg.mxu0
  %v469 = vsel %vm408, %v465, 0
  %471 = vmatpush.msra.mxu0 0.0
  %472 = vmatpush.msra.mxu0 0.0
  %473 = vmatpush.msra.mxu0 0.0
  %474 = vmatpush.msra.mxu0 0.0
  %475 = vmatpush.msra.mxu0 0.0
  %476 = vmatpush.msra.mxu0 0.0
  %477 = vmatpush.msra.mxu0 0.0
  %478 = vmatpush.msra.mxu0 0.0
  %479 = vmatpush.msra.mxu0 0.0
  %480 = vmatpush.msra.mxu0 0.0
  %481 = vmatpush.msra.mxu0 0.0
  %482 = vmatpush.msra.mxu0 0.0
  %483 = vmatpush.msra.mxu0 0.0
  %484 = vmatpush.msra.mxu0 0.0
  %485 = vmatpush.msra.mxu0 0.0
  %486 = vmatpush.msra.mxu0 %v469
  %487 = vmatmul.f32.gmra.mxu0 %v403
  %v488 = vpop.f32.mrf.mxu0
  %v489 = vadd.f32 0.0, %v488
  %490 = vmatmul.f32.gmra.mxu0 %v406
  %v491 = vpop.f32.mrf.mxu0
  %v492 = vadd.f32 0.0, %v491
  %493 = vdwg.mxu0
  %v494 = vmul.f32 %v489, 1.442695
  %v495 = vpow.pop %v494
  %v496 = vmul.f32 %v492, 1.442695
  %v497 = vpow.pop %v496
  %v499 = vsel %vm401, %v78, 0
  %v502 = vsel %vm401, %v79, 0
  %v505 = vsel %vm401, %v80, 0
  %v508 = vsel %vm401, %v81, 0
  %v511 = vsel %vm401, %v82, 0
  %v514 = vsel %vm401, %v83, 0
  %v517 = vsel %vm401, %v84, 0
  %v520 = vsel %vm401, %v85, 0
  %v523 = vsel %vm401, %v86, 0
  %v526 = vsel %vm401, %v87, 0
  %v529 = vsel %vm401, %v88, 0
  %v532 = vsel %vm401, %v89, 0
  %v535 = vsel %vm401, %v90, 0
  %v538 = vsel %vm401, %v91, 0
  %v541 = vsel %vm401, %v92, 0
  %v544 = vsel %vm401, %v93, 0
  %v547 = vsel %vm401, %v94, 0
  %v550 = vsel %vm401, %v95, 0
  %v553 = vsel %vm408, %v286, 0
  %555 = vmatpush.msra.mxu0 0.0
  %556 = vmatpush.msra.mxu0 0.0
  %557 = vmatpush.msra.mxu0 0.0
  %558 = vmatpush.msra.mxu0 0.0
  %559 = vmatpush.msra.mxu0 0.0
  %560 = vmatpush.msra.mxu0 0.0
  %561 = vmatpush.msra.mxu0 0.0
  %562 = vmatpush.msra.mxu0 0.0
  %563 = vmatpush.msra.mxu0 0.0
  %564 = vmatpush.msra.mxu0 0.0
  %565 = vmatpush.msra.mxu0 0.0
  %566 = vmatpush.msra.mxu0 0.0
  %567 = vmatpush.msra.mxu0 0.0
  %568 = vmatpush.msra.mxu0 0.0
  %569 = vmatpush.msra.mxu0 0.0
  %570 = vmatpush.msra.mxu0 %v553
  %571 = vmatmul.f32.gmra.mxu0 %v499
  %v572 = vpop.f32.mrf.mxu0
  %v573 = vadd.f32 0.0, %v572
  %574 = vmatmul.f32.gmra.mxu0 %v502
  %v575 = vpop.f32.mrf.mxu0
  %v576 = vadd.f32 0.0, %v575
  %577 = vmatmul.f32.gmra.mxu0 %v505
  %v578 = vpop.f32.mrf.mxu0
  %v579 = vadd.f32 0.0, %v578
  %580 = vmatmul.f32.gmra.mxu0 %v508
  %v581 = vpop.f32.mrf.mxu0
  %v582 = vadd.f32 0.0, %v581
  %583 = vmatmul.f32.gmra.mxu0 %v511
  %v584 = vpop.f32.mrf.mxu0
  %v585 = vadd.f32 0.0, %v584
  %586 = vmatmul.f32.gmra.mxu0 %v514
  %v587 = vpop.f32.mrf.mxu0
  %v588 = vadd.f32 0.0, %v587
  %589 = vmatmul.f32.gmra.mxu0 %v517
  %v590 = vpop.f32.mrf.mxu0
  %v591 = vadd.f32 0.0, %v590
  %592 = vmatmul.f32.gmra.mxu0 %v520
  %v593 = vpop.f32.mrf.mxu0
  %v594 = vadd.f32 0.0, %v593
  %595 = vmatmul.f32.gmra.mxu0 %v523
  %v596 = vpop.f32.mrf.mxu0
  %v597 = vadd.f32 0.0, %v596
  %598 = vmatmul.f32.gmra.mxu0 %v526
  %v599 = vpop.f32.mrf.mxu0
  %v600 = vadd.f32 0.0, %v599
  %601 = vmatmul.f32.gmra.mxu0 %v529
  %v602 = vpop.f32.mrf.mxu0
  %v603 = vadd.f32 0.0, %v602
  %604 = vmatmul.f32.gmra.mxu0 %v532
  %v605 = vpop.f32.mrf.mxu0
  %v606 = vadd.f32 0.0, %v605
  %607 = vmatmul.f32.gmra.mxu0 %v535
  %v608 = vpop.f32.mrf.mxu0
  %v609 = vadd.f32 0.0, %v608
  %610 = vmatmul.f32.gmra.mxu0 %v538
  %v611 = vpop.f32.mrf.mxu0
  %v612 = vadd.f32 0.0, %v611
  %613 = vmatmul.f32.gmra.mxu0 %v541
  %v614 = vpop.f32.mrf.mxu0
  %v615 = vadd.f32 0.0, %v614
  %616 = vmatmul.f32.gmra.mxu0 %v544
  %v617 = vpop.f32.mrf.mxu0
  %v618 = vadd.f32 0.0, %v617
  %619 = vmatmul.f32.gmra.mxu0 %v547
  %v620 = vpop.f32.mrf.mxu0
  %v621 = vadd.f32 0.0, %v620
  %622 = vmatmul.f32.gmra.mxu0 %v550
  %v623 = vpop.f32.mrf.mxu0
  %v624 = vadd.f32 0.0, %v623
  %625 = vdwg.mxu0
  %v626 = vld [vmem:[%s16] sm:$0x1]
  %v627 = vld [vmem:[%s17] sm:$0xf]
  %v628 = vld [vmem:[%s17 + $0x4] sm:$0xf]
  %v629 = vld [vmem:[%s17 + $0x8] sm:$0xf]
  %v630 = vld [vmem:[%s17 + $0xc] sm:$0xf]
  %v631 = vld [vmem:[%s18] sm:$0x1]
  %v632 = vpack.c.bf16 %v576, %v573
  %v633 = vpack.c.bf16 %v582, %v579
  %v634 = vpack.c.bf16 %v588, %v585
  %v635 = vpack.c.bf16 %v594, %v591
  %v636 = vpack.c.bf16 %v600, %v597
  %v637 = vpack.c.bf16 %v606, %v603
  %v638 = vpack.c.bf16 %v612, %v609
  %v639 = vpack.c.bf16 %v618, %v615
  %v640 = vpack.c.bf16 %v624, %v621
  %642 = vset.pattern.permute.xlu0 0
  %643 = vperm.xlu0 %642, %v100
  %v644 = vpop.permute.xlu0 %643
  %647 = vset.pattern.permute.xlu0 0
  %648 = vperm.xlu0 %647, %v101
  %v649 = vpop.permute.xlu0 %648
  %652 = vset.pattern.permute.xlu0 0
  %653 = vperm.xlu0 %652, %v102
  %v654 = vpop.permute.xlu0 %653
  %657 = vset.pattern.permute.xlu0 0
  %658 = vperm.xlu0 %657, %v103
  %v659 = vpop.permute.xlu0 %658
  %662 = vset.pattern.permute.xlu0 0
  %663 = vperm.xlu0 %662, %v104
  %v664 = vpop.permute.xlu0 %663
  %667 = vset.pattern.permute.xlu0 0
  %668 = vperm.xlu0 %667, %v105
  %v669 = vpop.permute.xlu0 %668
  %672 = vset.pattern.permute.xlu0 0
  %673 = vperm.xlu0 %672, %v106
  %v674 = vpop.permute.xlu0 %673
  %677 = vset.pattern.permute.xlu0 0
  %678 = vperm.xlu0 %677, %v107
  %v679 = vpop.permute.xlu0 %678
  %682 = vset.pattern.permute.xlu0 0
  %683 = vperm.xlu0 %682, %v108
  %v684 = vpop.permute.xlu0 %683
  %687 = vset.pattern.permute.xlu0 0
  %688 = vperm.xlu0 %687, %v109
  %v689 = vpop.permute.xlu0 %688
  %692 = vset.pattern.permute.xlu0 0
  %693 = vperm.xlu0 %692, %v110
  %v694 = vpop.permute.xlu0 %693
  %697 = vset.pattern.permute.xlu0 0
  %698 = vperm.xlu0 %697, %v111
  %v699 = vpop.permute.xlu0 %698
  %702 = vset.pattern.permute.xlu0 0
  %703 = vperm.xlu0 %702, %v112
  %v704 = vpop.permute.xlu0 %703
  %707 = vset.pattern.permute.xlu0 0
  %708 = vperm.xlu0 %707, %v113
  %v709 = vpop.permute.xlu0 %708
  %712 = vset.pattern.permute.xlu0 0
  %713 = vperm.xlu0 %712, %v114
  %v714 = vpop.permute.xlu0 %713
  %717 = vset.pattern.permute.xlu0 0
  %718 = vperm.xlu0 %717, %v115
  %v719 = vpop.permute.xlu0 %718
  %722 = vset.pattern.permute.xlu0 0
  %723 = vperm.xlu0 %722, %v116
  %v724 = vpop.permute.xlu0 %723
  %727 = vset.pattern.permute.xlu0 0
  %728 = vperm.xlu0 %727, %v117
  %v729 = vpop.permute.xlu0 %728
  %v732 = vperm.slane %v626, 0
  %v734 = vmul.f32 %v644, %v732
  %v735 = vmul.f32 %v649, %v732
  %v736 = vmul.f32 %v654, %v732
  %v737 = vmul.f32 %v659, %v732
  %v738 = vmul.f32 %v664, %v732
  %v739 = vmul.f32 %v669, %v732
  %v740 = vmul.f32 %v674, %v732
  %v741 = vmul.f32 %v679, %v732
  %v742 = vmul.f32 %v684, %v732
  %v743 = vmul.f32 %v689, %v732
  %v744 = vmul.f32 %v694, %v732
  %v745 = vmul.f32 %v699, %v732
  %v746 = vmul.f32 %v704, %v732
  %v747 = vmul.f32 %v709, %v732
  %v748 = vmul.f32 %v714, %v732
  %v749 = vmul.f32 %v719, %v732
  %v750 = vmul.f32 %v724, %v732
  %v751 = vmul.f32 %v729, %v732
  %v756 = vunpack.c.l.b16 %v627
  %v757 = vunpack.c.l.b16 %v628
  %v758 = vunpack.c.l.b16 %v629
  %v759 = vunpack.c.l.b16 %v630
  %v760 = vpack.c.b16 %v757, %v756
  %v761 = vpack.c.b16 %v759, %v758
  %v765 = vsel %vm308, %v632, 0
  %v768 = vsel %vm308, %v633, 0
  %v771 = vsel %vm308, %v634, 0
  %v774 = vsel %vm308, %v635, 0
  %v777 = vsel %vm308, %v636, 0
  %v780 = vsel %vm308, %v637, 0
  %v783 = vsel %vm308, %v638, 0
  %v786 = vsel %vm308, %v639, 0
  %v789 = vsel %vm308, %v640, 0
  %791 = vmatpush.bf16.msra.mxu0 0
  %792 = vmatpush.bf16.msra.mxu0 0
  %793 = vmatpush.bf16.msra.mxu0 0
  %794 = vmatpush.bf16.msra.mxu0 0
  %795 = vmatpush.bf16.msra.mxu0 0
  %796 = vmatpush.bf16.msra.mxu0 0
  %797 = vmatpush.bf16.msra.mxu0 %v761
  %798 = vmatpush.bf16.msra.mxu0 %v760
  %799 = vmatmul.bf16.gmra.mxu0 %v765
  %v800 = vpop.f32.mrf.mxu0
  %v801 = vadd.f32 %v734, %v800
  %v802 = vpop.f32.mrf.mxu0
  %v803 = vadd.f32 %v735, %v802
  %804 = vmatmul.bf16.gmra.mxu0 %v768
  %v805 = vpop.f32.mrf.mxu0
  %v806 = vadd.f32 %v736, %v805
  %v807 = vpop.f32.mrf.mxu0
  %v808 = vadd.f32 %v737, %v807
  %809 = vmatmul.bf16.gmra.mxu0 %v771
  %v810 = vpop.f32.mrf.mxu0
  %v811 = vadd.f32 %v738, %v810
  %v812 = vpop.f32.mrf.mxu0
  %v813 = vadd.f32 %v739, %v812
  %814 = vmatmul.bf16.gmra.mxu0 %v774
  %v815 = vpop.f32.mrf.mxu0
  %v816 = vadd.f32 %v740, %v815
  %v817 = vpop.f32.mrf.mxu0
  %v818 = vadd.f32 %v741, %v817
  %819 = vmatmul.bf16.gmra.mxu0 %v777
  %v820 = vpop.f32.mrf.mxu0
  %v821 = vadd.f32 %v742, %v820
  %v822 = vpop.f32.mrf.mxu0
  %v823 = vadd.f32 %v743, %v822
  %824 = vmatmul.bf16.gmra.mxu0 %v780
  %v825 = vpop.f32.mrf.mxu0
  %v826 = vadd.f32 %v744, %v825
  %v827 = vpop.f32.mrf.mxu0
  %v828 = vadd.f32 %v745, %v827
  %829 = vmatmul.bf16.gmra.mxu0 %v783
  %v830 = vpop.f32.mrf.mxu0
  %v831 = vadd.f32 %v746, %v830
  %v832 = vpop.f32.mrf.mxu0
  %v833 = vadd.f32 %v747, %v832
  %834 = vmatmul.bf16.gmra.mxu0 %v786
  %v835 = vpop.f32.mrf.mxu0
  %v836 = vadd.f32 %v748, %v835
  %v837 = vpop.f32.mrf.mxu0
  %v838 = vadd.f32 %v749, %v837
  %839 = vmatmul.bf16.gmra.mxu0 %v789
  %v840 = vpop.f32.mrf.mxu0
  %v841 = vadd.f32 %v750, %v840
  %v842 = vpop.f32.mrf.mxu0
  %v843 = vadd.f32 %v751, %v842
  %844 = vdwg.mxu0
  %v846 = vperm.slane %v631, 0
  %v848 = vadd.f32 %v801, %v846
  %v849 = vadd.f32 %v803, %v846
  %v850 = vadd.f32 %v806, %v846
  %v851 = vadd.f32 %v808, %v846
  %v852 = vadd.f32 %v811, %v846
  %v853 = vadd.f32 %v813, %v846
  %v854 = vadd.f32 %v816, %v846
  %v855 = vadd.f32 %v818, %v846
  %v856 = vadd.f32 %v821, %v846
  %v857 = vadd.f32 %v823, %v846
  %v858 = vadd.f32 %v826, %v846
  %v859 = vadd.f32 %v828, %v846
  %v860 = vadd.f32 %v831, %v846
  %v861 = vadd.f32 %v833, %v846
  %v862 = vadd.f32 %v836, %v846
  %v863 = vadd.f32 %v838, %v846
  %v864 = vadd.f32 %v841, %v846
  %v865 = vadd.f32 %v843, %v846
  %v866 = vmax.f32 %v848, 0.0
  %v867 = vmax.f32 %v849, 0.0
  %v868 = vmax.f32 %v850, 0.0
  %v869 = vmax.f32 %v851, 0.0
  %v870 = vmax.f32 %v852, 0.0
  %v871 = vmax.f32 %v853, 0.0
  %v872 = vmax.f32 %v854, 0.0
  %v873 = vmax.f32 %v855, 0.0
  %v874 = vmax.f32 %v856, 0.0
  %v875 = vmax.f32 %v857, 0.0
  %v876 = vmax.f32 %v858, 0.0
  %v877 = vmax.f32 %v859, 0.0
  %v878 = vmax.f32 %v860, 0.0
  %v879 = vmax.f32 %v861, 0.0
  %v880 = vmax.f32 %v862, 0.0
  %v881 = vmax.f32 %v863, 0.0
  %v882 = vmax.f32 %v864, 0.0
  %v883 = vmax.f32 %v865, 0.0
  %v884 = vld [vmem:[%s19] sm:$0xf]
  %v885 = vld [vmem:[%s19 + $0x4] sm:$0xf]
  %v886 = vld [vmem:[%s19 + $0x8] sm:$0xf]
  %v887 = vld [vmem:[%s19 + $0xc] sm:$0xf]
  %v888 = vpack.c.bf16 %v867, %v866
  %v889 = vpack.c.bf16 %v869, %v868
  %v890 = vpack.c.bf16 %v871, %v870
  %v891 = vpack.c.bf16 %v873, %v872
  %v892 = vpack.c.bf16 %v875, %v874
  %v893 = vpack.c.bf16 %v877, %v876
  %v894 = vpack.c.bf16 %v879, %v878
  %v895 = vpack.c.bf16 %v881, %v880
  %v896 = vpack.c.bf16 %v883, %v882
  %v897 = vld [vmem:[%s20] sm:$0x1]
  %v899 = vperm.slane %v897, 0
  %v905 = vunpack.c.l.b16 %v884
  %v906 = vunpack.c.l.b16 %v885
  %v907 = vunpack.c.l.b16 %v886
  %v908 = vunpack.c.l.b16 %v887
  %v909 = vpack.c.b16 %v906, %v905
  %v910 = vpack.c.b16 %v908, %v907
  %v914 = vsel %vm308, %v888, 0
  %v917 = vsel %vm308, %v889, 0
  %v920 = vsel %vm308, %v890, 0
  %v923 = vsel %vm308, %v891, 0
  %v926 = vsel %vm308, %v892, 0
  %v929 = vsel %vm308, %v893, 0
  %v932 = vsel %vm308, %v894, 0
  %v935 = vsel %vm308, %v895, 0
  %v938 = vsel %vm308, %v896, 0
  %940 = vmatpush.bf16.msra.mxu0 0
  %941 = vmatpush.bf16.msra.mxu0 0
  %942 = vmatpush.bf16.msra.mxu0 0
  %943 = vmatpush.bf16.msra.mxu0 0
  %944 = vmatpush.bf16.msra.mxu0 0
  %945 = vmatpush.bf16.msra.mxu0 0
  %946 = vmatpush.bf16.msra.mxu0 %v910
  %947 = vmatpush.bf16.msra.mxu0 %v909
  %948 = vmatmul.bf16.gmra.mxu0 %v914
  %v949 = vpop.f32.mrf.mxu0
  %v950 = vadd.f32 %v899, %v949
  %v951 = vpop.f32.mrf.mxu0
  %v952 = vadd.f32 %v899, %v951
  %953 = vmatmul.bf16.gmra.mxu0 %v917
  %v954 = vpop.f32.mrf.mxu0
  %v955 = vadd.f32 %v899, %v954
  %v956 = vpop.f32.mrf.mxu0
  %v957 = vadd.f32 %v899, %v956
  %958 = vmatmul.bf16.gmra.mxu0 %v920
  %v959 = vpop.f32.mrf.mxu0
  %v960 = vadd.f32 %v899, %v959
  %v961 = vpop.f32.mrf.mxu0
  %v962 = vadd.f32 %v899, %v961
  %963 = vmatmul.bf16.gmra.mxu0 %v923
  %v964 = vpop.f32.mrf.mxu0
  %v965 = vadd.f32 %v899, %v964
  %v966 = vpop.f32.mrf.mxu0
  %v967 = vadd.f32 %v899, %v966
  %968 = vmatmul.bf16.gmra.mxu0 %v926
  %v969 = vpop.f32.mrf.mxu0
  %v970 = vadd.f32 %v899, %v969
  %v971 = vpop.f32.mrf.mxu0
  %v972 = vadd.f32 %v899, %v971
  %973 = vmatmul.bf16.gmra.mxu0 %v929
  %v974 = vpop.f32.mrf.mxu0
  %v975 = vadd.f32 %v899, %v974
  %v976 = vpop.f32.mrf.mxu0
  %v977 = vadd.f32 %v899, %v976
  %978 = vmatmul.bf16.gmra.mxu0 %v932
  %v979 = vpop.f32.mrf.mxu0
  %v980 = vadd.f32 %v899, %v979
  %v981 = vpop.f32.mrf.mxu0
  %v982 = vadd.f32 %v899, %v981
  %983 = vmatmul.bf16.gmra.mxu0 %v935
  %v984 = vpop.f32.mrf.mxu0
  %v985 = vadd.f32 %v899, %v984
  %v986 = vpop.f32.mrf.mxu0
  %v987 = vadd.f32 %v899, %v986
  %988 = vmatmul.bf16.gmra.mxu0 %v938
  %v989 = vpop.f32.mrf.mxu0
  %v990 = vadd.f32 %v899, %v989
  %v991 = vpop.f32.mrf.mxu0
  %v992 = vadd.f32 %v899, %v991
  %993 = vdwg.mxu0
  %v994 = vmax.f32 %v950, 0.0
  %v995 = vmax.f32 %v952, 0.0
  %v996 = vmax.f32 %v955, 0.0
  %v997 = vmax.f32 %v957, 0.0
  %v998 = vmax.f32 %v960, 0.0
  %v999 = vmax.f32 %v962, 0.0
  %v1000 = vmax.f32 %v965, 0.0
  %v1001 = vmax.f32 %v967, 0.0
  %v1002 = vmax.f32 %v970, 0.0
  %v1003 = vmax.f32 %v972, 0.0
  %v1004 = vmax.f32 %v975, 0.0
  %v1005 = vmax.f32 %v977, 0.0
  %v1006 = vmax.f32 %v980, 0.0
  %v1007 = vmax.f32 %v982, 0.0
  %v1008 = vmax.f32 %v985, 0.0
  %v1009 = vmax.f32 %v987, 0.0
  %v1010 = vmax.f32 %v990, 0.0
  %v1011 = vmax.f32 %v992, 0.0
  %v1012 = vld [vmem:[%s21] sm:$0xf]
  %v1013 = vld [vmem:[%s21 + $0x4] sm:$0xf]
  %v1014 = vld [vmem:[%s21 + $0x8] sm:$0xf]
  %v1015 = vld [vmem:[%s21 + $0xc] sm:$0xf]
  %v1016 = vpack.c.bf16 %v995, %v994
  %v1017 = vpack.c.bf16 %v997, %v996
  %v1018 = vpack.c.bf16 %v999, %v998
  %v1019 = vpack.c.bf16 %v1001, %v1000
  %v1020 = vpack.c.bf16 %v1003, %v1002
  %v1021 = vpack.c.bf16 %v1005, %v1004
  %v1022 = vpack.c.bf16 %v1007, %v1006
  %v1023 = vpack.c.bf16 %v1009, %v1008
  %v1024 = vpack.c.bf16 %v1011, %v1010
  %v1025 = vld [vmem:[%s22] sm:$0x1]
  %v1027 = vperm.slane %v1025, 0
  %v1033 = vunpack.c.l.b16 %v1012
  %v1034 = vunpack.c.l.b16 %v1013
  %v1035 = vunpack.c.l.b16 %v1014
  %v1036 = vunpack.c.l.b16 %v1015
  %v1037 = vpack.c.b16 %v1034, %v1033
  %v1038 = vpack.c.b16 %v1036, %v1035
  %v1042 = vsel %vm308, %v1016, 0
  %v1045 = vsel %vm308, %v1017, 0
  %v1048 = vsel %vm308, %v1018, 0
  %v1051 = vsel %vm308, %v1019, 0
  %v1054 = vsel %vm308, %v1020, 0
  %v1057 = vsel %vm308, %v1021, 0
  %v1060 = vsel %vm308, %v1022, 0
  %v1063 = vsel %vm308, %v1023, 0
  %v1066 = vsel %vm308, %v1024, 0
  %1068 = vmatpush.bf16.msra.mxu0 0
  %1069 = vmatpush.bf16.msra.mxu0 0
  %1070 = vmatpush.bf16.msra.mxu0 0
  %1071 = vmatpush.bf16.msra.mxu0 0
  %1072 = vmatpush.bf16.msra.mxu0 0
  %1073 = vmatpush.bf16.msra.mxu0 0
  %1074 = vmatpush.bf16.msra.mxu0 %v1038
  %1075 = vmatpush.bf16.msra.mxu0 %v1037
  %1076 = vmatmul.bf16.gmra.mxu0 %v1042
  %v1077 = vpop.f32.mrf.mxu0
  %v1078 = vadd.f32 %v1027, %v1077
  %v1079 = vpop.f32.mrf.mxu0
  %v1080 = vadd.f32 %v1027, %v1079
  %1081 = vmatmul.bf16.gmra.mxu0 %v1045
  %v1082 = vpop.f32.mrf.mxu0
  %v1083 = vadd.f32 %v1027, %v1082
  %v1084 = vpop.f32.mrf.mxu0
  %v1085 = vadd.f32 %v1027, %v1084
  %1086 = vmatmul.bf16.gmra.mxu0 %v1048
  %v1087 = vpop.f32.mrf.mxu0
  %v1088 = vadd.f32 %v1027, %v1087
  %v1089 = vpop.f32.mrf.mxu0
  %v1090 = vadd.f32 %v1027, %v1089
  %1091 = vmatmul.bf16.gmra.mxu0 %v1051
  %v1092 = vpop.f32.mrf.mxu0
  %v1093 = vadd.f32 %v1027, %v1092
  %v1094 = vpop.f32.mrf.mxu0
  %v1095 = vadd.f32 %v1027, %v1094
  %1096 = vmatmul.bf16.gmra.mxu0 %v1054
  %v1097 = vpop.f32.mrf.mxu0
  %v1098 = vadd.f32 %v1027, %v1097
  %v1099 = vpop.f32.mrf.mxu0
  %v1100 = vadd.f32 %v1027, %v1099
  %1101 = vmatmul.bf16.gmra.mxu0 %v1057
  %v1102 = vpop.f32.mrf.mxu0
  %v1103 = vadd.f32 %v1027, %v1102
  %v1104 = vpop.f32.mrf.mxu0
  %v1105 = vadd.f32 %v1027, %v1104
  %1106 = vmatmul.bf16.gmra.mxu0 %v1060
  %v1107 = vpop.f32.mrf.mxu0
  %v1108 = vadd.f32 %v1027, %v1107
  %v1109 = vpop.f32.mrf.mxu0
  %v1110 = vadd.f32 %v1027, %v1109
  %1111 = vmatmul.bf16.gmra.mxu0 %v1063
  %v1112 = vpop.f32.mrf.mxu0
  %v1113 = vadd.f32 %v1027, %v1112
  %v1114 = vpop.f32.mrf.mxu0
  %v1115 = vadd.f32 %v1027, %v1114
  %1116 = vmatmul.bf16.gmra.mxu0 %v1066
  %v1117 = vpop.f32.mrf.mxu0
  %v1118 = vadd.f32 %v1027, %v1117
  %v1119 = vpop.f32.mrf.mxu0
  %v1120 = vadd.f32 %v1027, %v1119
  %1121 = vdwg.mxu0
  %vm1122 = vcmp.gt.f32.partialorder %v1078, 0.0
  %vm1123 = vcmp.gt.f32.partialorder %v1080, 0.0
  %vm1124 = vcmp.gt.f32.partialorder %v1083, 0.0
  %vm1125 = vcmp.gt.f32.partialorder %v1085, 0.0
  %vm1126 = vcmp.gt.f32.partialorder %v1088, 0.0
  %vm1127 = vcmp.gt.f32.partialorder %v1090, 0.0
  %vm1128 = vcmp.gt.f32.partialorder %v1093, 0.0
  %vm1129 = vcmp.gt.f32.partialorder %v1095, 0.0
  %vm1130 = vcmp.gt.f32.partialorder %v1098, 0.0
  %vm1131 = vcmp.gt.f32.partialorder %v1100, 0.0
  %vm1132 = vcmp.gt.f32.partialorder %v1103, 0.0
  %vm1133 = vcmp.gt.f32.partialorder %v1105, 0.0
  %vm1134 = vcmp.gt.f32.partialorder %v1108, 0.0
  %vm1135 = vcmp.gt.f32.partialorder %v1110, 0.0
  %vm1136 = vcmp.gt.f32.partialorder %v1113, 0.0
  %vm1137 = vcmp.gt.f32.partialorder %v1115, 0.0
  %vm1138 = vcmp.gt.f32.partialorder %v1118, 0.0
  %vm1139 = vcmp.gt.f32.partialorder %v1120, 0.0
  %v1140 = vadd.f32 %v1078, 1.0
  %v1141 = vadd.f32 %v1080, 1.0
  %v1142 = vadd.f32 %v1083, 1.0
  %v1143 = vadd.f32 %v1085, 1.0
  %v1144 = vadd.f32 %v1088, 1.0
  %v1145 = vadd.f32 %v1090, 1.0
  %v1146 = vadd.f32 %v1093, 1.0
  %v1147 = vadd.f32 %v1095, 1.0
  %v1148 = vadd.f32 %v1098, 1.0
  %v1149 = vadd.f32 %v1100, 1.0
  %v1150 = vadd.f32 %v1103, 1.0
  %v1151 = vadd.f32 %v1105, 1.0
  %v1152 = vadd.f32 %v1108, 1.0
  %v1153 = vadd.f32 %v1110, 1.0
  %v1154 = vadd.f32 %v1113, 1.0
  %v1155 = vadd.f32 %v1115, 1.0
  %v1156 = vadd.f32 %v1118, 1.0
  %v1157 = vadd.f32 %v1120, 1.0
  %v1158 = vmul.f32 %v1078, 1.442695
  %v1159 = vpow.pop %v1158
  %v1160 = vmul.f32 %v1080, 1.442695
  %v1161 = vpow.pop %v1160
  %v1162 = vmul.f32 %v1083, 1.442695
  %v1163 = vpow.pop %v1162
  %v1164 = vmul.f32 %v1085, 1.442695
  %v1165 = vpow.pop %v1164
  %v1166 = vmul.f32 %v1088, 1.442695
  %v1167 = vpow.pop %v1166
  %v1168 = vmul.f32 %v1090, 1.442695
  %v1169 = vpow.pop %v1168
  %v1170 = vmul.f32 %v1093, 1.442695
  %v1171 = vpow.pop %v1170
  %v1172 = vmul.f32 %v1095, 1.442695
  %v1173 = vpow.pop %v1172
  %v1174 = vmul.f32 %v1098, 1.442695
  %v1175 = vpow.pop %v1174
  %v1176 = vmul.f32 %v1100, 1.442695
  %v1177 = vpow.pop %v1176
  %v1178 = vmul.f32 %v1103, 1.442695
  %v1179 = vpow.pop %v1178
  %v1180 = vmul.f32 %v1105, 1.442695
  %v1181 = vpow.pop %v1180
  %v1182 = vmul.f32 %v1108, 1.442695
  %v1183 = vpow.pop %v1182
  %v1184 = vmul.f32 %v1110, 1.442695
  %v1185 = vpow.pop %v1184
  %v1186 = vmul.f32 %v1113, 1.442695
  %v1187 = vpow.pop %v1186
  %v1188 = vmul.f32 %v1115, 1.442695
  %v1189 = vpow.pop %v1188
  %v1190 = vmul.f32 %v1118, 1.442695
  %v1191 = vpow.pop %v1190
  %v1192 = vmul.f32 %v1120, 1.442695
  %v1193 = vpow.pop %v1192
  %v1194 = vsel %vm1122, %v1140, %v1159
  %v1195 = vsel %vm1123, %v1141, %v1161
  %v1196 = vsel %vm1124, %v1142, %v1163
  %v1197 = vsel %vm1125, %v1143, %v1165
  %v1198 = vsel %vm1126, %v1144, %v1167
  %v1199 = vsel %vm1127, %v1145, %v1169
  %v1200 = vsel %vm1128, %v1146, %v1171
  %v1201 = vsel %vm1129, %v1147, %v1173
  %v1202 = vsel %vm1130, %v1148, %v1175
  %v1203 = vsel %vm1131, %v1149, %v1177
  %v1204 = vsel %vm1132, %v1150, %v1179
  %v1205 = vsel %vm1133, %v1151, %v1181
  %v1206 = vsel %vm1134, %v1152, %v1183
  %v1207 = vsel %vm1135, %v1153, %v1185
  %v1208 = vsel %vm1136, %v1154, %v1187
  %v1209 = vsel %vm1137, %v1155, %v1189
  %v1210 = vsel %vm1138, %v1156, %v1191
  %v1211 = vsel %vm1139, %v1157, %v1193
  %vm1212 = vcmask 130048
  %v1214 = vsel %vm1212, %v97, 0
  %v1217 = vsel %vm1212, %v99, 0
  %1219 = vmatpush.msra.mxu0 %v1209
  %1220 = vmatpush.msra.mxu0 %v1208
  %1221 = vmatpush.msra.mxu0 %v1207
  %1222 = vmatpush.msra.mxu0 %v1206
  %1223 = vmatpush.msra.mxu0 %v1205
  %1224 = vmatpush.msra.mxu0 %v1204
  %1225 = vmatpush.msra.mxu0 %v1203
  %1226 = vmatpush.msra.mxu0 %v1202
  %1227 = vmatpush.msra.mxu0 %v1201
  %1228 = vmatpush.msra.mxu0 %v1200
  %1229 = vmatpush.msra.mxu0 %v1199
  %1230 = vmatpush.msra.mxu0 %v1198
  %1231 = vmatpush.msra.mxu0 %v1197
  %1232 = vmatpush.msra.mxu0 %v1196
  %1233 = vmatpush.msra.mxu0 %v1195
  %1234 = vmatpush.msra.mxu0 %v1194
  %1235 = vmatmul.f32.gmra.mxu0 %v96
  %v1236 = vpop.f32.mrf.mxu0
  %v1237 = vadd.f32 0.0, %v1236
  %1238 = vmatmul.f32.gmra.mxu0 %v98
  %v1239 = vpop.f32.mrf.mxu0
  %v1240 = vadd.f32 0.0, %v1239
  %1241 = vdwg.mxu0
  %1242 = vmatpush.msra.mxu0 0.0
  %1243 = vmatpush.msra.mxu0 0.0
  %1244 = vmatpush.msra.mxu0 0.0
  %1245 = vmatpush.msra.mxu0 0.0
  %1246 = vmatpush.msra.mxu0 0.0
  %1247 = vmatpush.msra.mxu0 0.0
  %1248 = vmatpush.msra.mxu0 0.0
  %1249 = vmatpush.msra.mxu0 0.0
  %1250 = vmatpush.msra.mxu0 0.0
  %1251 = vmatpush.msra.mxu0 0.0
  %1252 = vmatpush.msra.mxu0 0.0
  %1253 = vmatpush.msra.mxu0 0.0
  %1254 = vmatpush.msra.mxu0 0.0
  %1255 = vmatpush.msra.mxu0 0.0
  %1256 = vmatpush.msra.mxu0 %v1211
  %1257 = vmatpush.msra.mxu0 %v1210
  %1258 = vmatmul.f32.gmra.mxu0 %v1214
  %v1259 = vpop.f32.mrf.mxu0
  %v1260 = vadd.f32 %v1237, %v1259
  %1261 = vmatmul.f32.gmra.mxu0 %v1217
  %v1262 = vpop.f32.mrf.mxu0
  %v1263 = vadd.f32 %v1240, %v1262
  %1264 = vdwg.mxu0
  %v1265 = vmul.f32 %v118, 0.5
  %v1266 = vmul.f32 %v119, 0.5
  %1268 = vset.pattern.permute.xlu0 0
  %1269 = vperm.xlu0 %1268, %v1265
  %v1270 = vpop.permute.xlu0 %1269
  %1273 = vset.pattern.permute.xlu0 0
  %1274 = vperm.xlu0 %1273, %v1266
  %v1275 = vpop.permute.xlu0 %1274
  %v1277 = vmul.f32 %v495, %v1270
  %v1278 = vmul.f32 %v497, %v1275
  %v1279 = vmul.f32 %v1277, %v1260
  %v1280 = vmul.f32 %v1278, %v1263
  %v1281 = vadd.f32 %v1279, %v430
  %v1282 = vadd.f32 %v1280, %v433
  %vm1283 = vcmask 31744
  %1284 = vst.msk [vmem:[%s23] sm:$0xff] %vm1283, %v1281
  %1285 = vst.msk [vmem:[%s23 + $0x8] sm:$0xff] %vm1283, %v1282
  // Predicated region
  $region94: #{forward.7} parent=0 // pred_check
    _
  $region95: #{forward.7} parent=0 // pred_check_branch
    %1287 = sbr.rel (0) target = $region97
  $region96: #{forward.7} parent=0 // pred_region
    _
  $region97: #{forward.7} parent=0 // pred_fallthru
    _
  // Predicated region
  $region98: #{forward.7} parent=0 // pred_check
    _
  $region99: #{forward.7} parent=0 // pred_check_branch
    %1289 = sbr.rel (0) target = $region101
  $region100: #{forward.7} parent=0 // pred_region
    _
  $region101: #{forward.7} parent=0 // pred_fallthru
    _

</llo_original>
